<compile_context>
chip_gen: v7x
topology: tpu7x:2x2x1
jax: 0.10.0
libtpu: 0.0.40
codegen_flags: <defaults>
</compile_context>

<pallas_src>
import functools

import jax
import jax.numpy as jnp
from jax.experimental import pallas as pl
from jax.experimental.pallas import tpu as pltpu

LANE = 128            # TPU lane width; output channel dims are padded to this.
MAX_TILE_M = 512      # max rows per tile (keeps blocks far below VMEM limits)
MAX_SINGLE_K = 2048   # contractions larger than this are K-tiled
TILE_K = 512
VMEM_LIMIT = 32 * 1024 * 1024   # safe on v5e / v6e / v7x


def _round_up(x, m):
    return (x + m - 1) // m * m


def _m_tiling(m):
    """(row-tile size, padded row count) for an (m, ...) operand."""
    m8 = _round_up(max(m, 1), 8)
    if m8 <= MAX_TILE_M:
        return m8, m8
    return MAX_TILE_M, _round_up(m, MAX_TILE_M)


def _k_tiling(k):
    if k <= MAX_SINGLE_K:
        return k, k
    return TILE_K, _round_up(k, TILE_K)


# ---------------------------------------------------------------------------
# Kernel 1: tiled matmul + bias (embedding / final linear, no BN, no gamma/beta)
#   grid = (n_m, n_k); K innermost ("arbitrary"); fp32 accumulator in VMEM.
# ---------------------------------------------------------------------------
def _matmul_bias_kernel(x_ref, w_ref, b_ref, o_ref, acc_ref):
    k = pl.program_id(1)

    @pl.when(k == 0)
    def _():
        acc_ref[...] = jnp.zeros_like(acc_ref)

    acc_ref[...] += jnp.dot(x_ref[...], w_ref[...],
                            preferred_element_type=jnp.float32)

    @pl.when(k == pl.num_programs(1) - 1)
    def _():
        o_ref[...] = (acc_ref[...] + b_ref[...]).astype(o_ref.dtype)


def matmul_bias(x, w_bf16, bias_f32, *, out_dtype):
    """x:(M,K) @ w:(K,Np) + bias:(1,Np). Np is a multiple of 128.

    Returns the padded (Mp, Np) result; the caller slices the padding off."""
    M, K = x.shape
    Np = w_bf16.shape[1]
    tile_m, Mp = _m_tiling(M)
    tile_k, Kp = _k_tiling(K)
    xb = x.astype(jnp.bfloat16)
    if (Mp, Kp) != (M, K):
        xb = jnp.pad(xb, ((0, Mp - M), (0, Kp - K)))
    wb = w_bf16
    if Kp != K:
        wb = jnp.pad(wb, ((0, Kp - K), (0, 0)))
    n_m, n_k = Mp // tile_m, Kp // tile_k
    return pl.pallas_call(
        _matmul_bias_kernel,
        out_shape=jax.ShapeDtypeStruct((Mp, Np), out_dtype),
        grid=(n_m, n_k),
        in_specs=[
            pl.BlockSpec((tile_m, tile_k), lambda m, k: (m, k)),
            pl.BlockSpec((tile_k, Np), lambda m, k: (k, 0)),
            pl.BlockSpec((1, Np), lambda m, k: (0, 0)),
        ],
        out_specs=pl.BlockSpec((tile_m, Np), lambda m, k: (m, 0)),
        scratch_shapes=[pltpu.VMEM((tile_m, Np), jnp.float32)],
        compiler_params=pltpu.CompilerParams(
            dimension_semantics=("parallel", "arbitrary"),
            vmem_limit_bytes=VMEM_LIMIT),
    )(xb, wb, bias_f32)


# ---------------------------------------------------------------------------
# Kernel 2 (conv pass 1): tiled im2col-matmul + global per-channel stats.
#   y output is tiled over M (stored bf16); sum / sum-of-squares outputs are
#   resident across the whole grid (index_map -> (0,0)), zeroed at the first
#   grid step and accumulated in f32 from the f32 accumulator.
#   No conv bias (it cancels under training-mode BN).
# ---------------------------------------------------------------------------
def _conv_matmul_stats_kernel(x_ref, w_ref, y_ref, sum_ref, sq_ref, acc_ref):
    m = pl.program_id(0)
    k = pl.program_id(1)

    @pl.when(jnp.logical_and(m == 0, k == 0))
    def _():
        sum_ref[...] = jnp.zeros_like(sum_ref)
        sq_ref[...] = jnp.zeros_like(sq_ref)

    @pl.when(k == 0)
    def _():
        acc_ref[...] = jnp.zeros_like(acc_ref)

    acc_ref[...] += jnp.dot(x_ref[...], w_ref[...],
                            preferred_element_type=jnp.float32)

    @pl.when(k == pl.num_programs(1) - 1)
    def _():
        y = acc_ref[...]
        y_ref[...] = y.astype(y_ref.dtype)
        # zero-padded rows / channels contribute exactly 0 to both sums.
        sum_ref[...] += jnp.sum(y, axis=0, keepdims=True)
        sq_ref[...] += jnp.sum(y * y, axis=0, keepdims=True)


def conv_matmul_stats(patches_bf16, w_bf16):
    M, K = patches_bf16.shape
    Np = w_bf16.shape[1]
    tile_m, Mp = _m_tiling(M)
    tile_k, Kp = _k_tiling(K)
    xb = patches_bf16
    if (Mp, Kp) != (M, K):
        xb = jnp.pad(xb, ((0, Mp - M), (0, Kp - K)))
    wb = w_bf16
    if Kp != K:
        wb = jnp.pad(wb, ((0, Kp - K), (0, 0)))
    n_m, n_k = Mp // tile_m, Kp // tile_k
    return pl.pallas_call(
        _conv_matmul_stats_kernel,
        out_shape=(jax.ShapeDtypeStruct((Mp, Np), jnp.bfloat16),
                   jax.ShapeDtypeStruct((1, Np), jnp.float32),
                   jax.ShapeDtypeStruct((1, Np), jnp.float32)),
        grid=(n_m, n_k),
        in_specs=[
            pl.BlockSpec((tile_m, tile_k), lambda m, k: (m, k)),
            pl.BlockSpec((tile_k, Np), lambda m, k: (k, 0)),
        ],
        out_specs=(
            pl.BlockSpec((tile_m, Np), lambda m, k: (m, 0)),
            pl.BlockSpec((1, Np), lambda m, k: (0, 0)),
            pl.BlockSpec((1, Np), lambda m, k: (0, 0)),
        ),
        scratch_shapes=[pltpu.VMEM((tile_m, Np), jnp.float32)],
        # stats outputs are resident across the M axis -> both axes arbitrary.
        compiler_params=pltpu.CompilerParams(
            dimension_semantics=("arbitrary", "arbitrary"),
            vmem_limit_bytes=VMEM_LIMIT),
    )(xb, wb)


# ---------------------------------------------------------------------------
# Kernel 3 (conv pass 2): BN (training-mode batch stats, biased var) + ReLU.
# ---------------------------------------------------------------------------
def _bn_relu_kernel(y_ref, sum_ref, sq_ref, g_ref, b_ref, o_ref, *, inv_m, eps):
    mu = sum_ref[...] * inv_m                               # (1, N)
    var = jnp.maximum(sq_ref[...] * inv_m - mu * mu, 0.0)   # biased variance
    scale = g_ref[...] * jax.lax.rsqrt(var + eps)
    shift = b_ref[...] - mu * scale
    y = y_ref[...].astype(jnp.float32)
    o_ref[...] = jnp.maximum(y * scale + shift, 0.0).astype(o_ref.dtype)


def bn_relu_apply(y, col_sum, col_sq, gamma_p, beta_p, *, m_real, eps):
    Mp, Np = y.shape
    tile_m, mp_check = _m_tiling(m_real)
    assert mp_check == Mp
    n_m = Mp // tile_m
    kern = functools.partial(_bn_relu_kernel, inv_m=1.0 / float(m_real), eps=eps)
    return pl.pallas_call(
        kern,
        out_shape=jax.ShapeDtypeStruct((Mp, Np), jnp.bfloat16),
        grid=(n_m,),
        in_specs=[
            pl.BlockSpec((tile_m, Np), lambda m: (m, 0)),
            pl.BlockSpec((1, Np), lambda m: (0, 0)),
            pl.BlockSpec((1, Np), lambda m: (0, 0)),
            pl.BlockSpec((1, Np), lambda m: (0, 0)),
            pl.BlockSpec((1, Np), lambda m: (0, 0)),
        ],
        out_specs=pl.BlockSpec((tile_m, Np), lambda m: (m, 0)),
        compiler_params=pltpu.CompilerParams(
            dimension_semantics=("parallel",),
            vmem_limit_bytes=VMEM_LIMIT),
    )(y, col_sum, col_sq, gamma_p, beta_p)


# ---------------------------------------------------------------------------
# Conv2d(k=4,s=2,p=1, bias dropped) + BatchNorm2d(train) + ReLU (NHWC).
# ---------------------------------------------------------------------------
def conv_bn_relu_layer(h_nhwc, w2p_bf16, gamma_p, beta_p, cout, *, eps):
    B, H, W, Cin = h_nhwc.shape
    KH = KW = 4
    Ho = (H + 2 - KH) // 2 + 1
    Wo = (W + 2 - KW) // 2 + 1
    # TODO(synk): im2col patch extraction (pad + 16 strided slices) stays in
    # XLA glue; an in-kernel strided-window gather (per-tile make_async_copy)
    # would avoid materializing the expanded patch tensor in HBM.
    xp = jnp.pad(h_nhwc, ((0, 0), (1, 1), (1, 1), (0, 0)))
    taps = [xp[:, kh:kh + 2 * Ho:2, kw:kw + 2 * Wo:2, :]
            for kh in range(KH) for kw in range(KW)]
    patches = jnp.stack(taps, axis=3).reshape(B * Ho * Wo, KH * KW * Cin)
    patches = patches.astype(jnp.bfloat16)

    m_real = B * Ho * Wo
    y, col_sum, col_sq = conv_matmul_stats(patches, w2p_bf16)
    act = bn_relu_apply(y, col_sum, col_sq, gamma_p, beta_p,
                        m_real=m_real, eps=eps)
    return act[:m_real, :cout].reshape(B, Ho, Wo, cout)


# ---------------------------------------------------------------------------
# Parameter construction (deterministic, mirrors the module's __init__ loop)
# ---------------------------------------------------------------------------
def make_params(key, input_size, output_size, sequence_length,
                embedding_dim, fbase):
    assert 4 <= sequence_length <= 164
    keys = jax.random.split(key, 16)
    kidx = 0

    def nk():
        nonlocal kidx
        k = keys[kidx]
        kidx += 1
        return k

    params = {}
    params["emb_w"] = 0.1 * jax.random.normal(
        nk(), (input_size, embedding_dim), jnp.float32)
    params["emb_b"] = 0.01 * jax.random.normal(nk(), (embedding_dim,), jnp.float32)

    conv_layers = []
    in_ch, out_ch = 1, fbase
    cur_h, cur_w = sequence_length, embedding_dim
    while cur_h >= 4 and cur_w >= 4:
        w = 0.1 * jax.random.normal(nk(), (out_ch, in_ch, 4, 4), jnp.float32)
        b = 0.01 * jax.random.normal(nk(), (out_ch,), jnp.float32)
        g = jnp.ones((out_ch,), jnp.float32)
        bt = jnp.zeros((out_ch,), jnp.float32)
        conv_layers.append((w, b, g, bt))
        cur_h = (cur_h + 2 - 4) // 2 + 1
        cur_w = (cur_w + 2 - 4) // 2 + 1
        in_ch = out_ch
        out_ch = min(out_ch * 2, fbase * 8)
    params["conv_layers"] = conv_layers

    ldim = in_ch * cur_h * cur_w
    params["lin_w"] = 0.1 * jax.random.normal(nk(), (ldim, output_size), jnp.float32)
    params["lin_b"] = 0.01 * jax.random.normal(nk(), (output_size,), jnp.float32)
    params["ldim"] = ldim
    params["final_chw"] = (in_ch, cur_h, cur_w)
    return params


def prepare_params(params):
    """Pad / cast / permute the PyTorch-layout parameters for the kernels.

    Returns (prep, meta): `prep` is a pytree of jnp arrays only (safe to pass
    through jax.jit); `meta` holds the static shape metadata."""
    prep = {}
    _, E = params["emb_w"].shape
    Ep = _round_up(E, LANE)
    prep["emb_w"] = jnp.pad(params["emb_w"], ((0, 0), (0, Ep - E))).astype(jnp.bfloat16)
    prep["emb_b"] = jnp.pad(params["emb_b"], (0, Ep - E)).reshape(1, Ep).astype(jnp.float32)

    conv_w, conv_g, conv_b, conv_cout = [], [], [], []
    for (w, b, g, bt) in params["conv_layers"]:
        Cout, Cin, KH, KW = w.shape
        Cp = _round_up(Cout, LANE)
        # conv bias `b` is dropped: it cancels under training-mode BatchNorm.
        w2 = jnp.transpose(w, (2, 3, 1, 0)).reshape(KH * KW * Cin, Cout)
        conv_w.append(jnp.pad(w2, ((0, 0), (0, Cp - Cout))).astype(jnp.bfloat16))
        conv_g.append(jnp.pad(g, (0, Cp - Cout)).reshape(1, Cp).astype(jnp.float32))
        conv_b.append(jnp.pad(bt, (0, Cp - Cout)).reshape(1, Cp).astype(jnp.float32))
        conv_cout.append(Cout)
    prep["conv_w"] = conv_w
    prep["conv_g"] = conv_g
    prep["conv_b"] = conv_b

    C, Hf, Wf = params["final_chw"]
    OUT = params["lin_w"].shape[1]
    Op = _round_up(OUT, LANE)
    # Fold the NCHW flatten into the linear weight: permute rows so that an
    # NHWC flatten of the last conv activation matches PyTorch's x.view(B,-1).
    lw = params["lin_w"].reshape(C, Hf, Wf, OUT).transpose(1, 2, 0, 3)
    lw = lw.reshape(C * Hf * Wf, OUT)
    prep["lin_w"] = jnp.pad(lw, ((0, 0), (0, Op - OUT))).astype(jnp.bfloat16)
    prep["lin_b"] = jnp.pad(params["lin_b"], (0, Op - OUT)).reshape(1, Op).astype(jnp.float32)

    meta = {"emb_dim": E, "out_size": OUT, "conv_cout": tuple(conv_cout)}
    return prep, meta


# ---------------------------------------------------------------------------
# Forward pass built from the Pallas kernels (jitted end to end)
# ---------------------------------------------------------------------------
def make_forward(params, eps=1e-5):
    prep, meta = prepare_params(params)

    def fwd(x, prep):
        B, S, IN = x.shape
        E = meta["emb_dim"]

        # Embedding (Linear, no BN/ReLU): (B*S, IN) @ (IN, Ep) + bias.
        emb = matmul_bias(x.reshape(B * S, IN), prep["emb_w"], prep["emb_b"],
                          out_dtype=jnp.bfloat16)
        emb = emb[:B * S, :E]                  # strip M / lane padding
        # unsqueeze(1) in NCHW == channels-last NHWC image with C=1.
        h = emb.reshape(B, S, E, 1)

        for li, cout in enumerate(meta["conv_cout"]):
            h = conv_bn_relu_layer(h, prep["conv_w"][li], prep["conv_g"][li],
                                   prep["conv_b"][li], cout, eps=eps)

        # NHWC flatten; lin_w rows were pre-permuted to match NCHW x.view(B,-1).
        _, Ho, Wo, C = h.shape
        flat = h.reshape(B, Ho * Wo * C)
        out = matmul_bias(flat, prep["lin_w"], prep["lin_b"], out_dtype=jnp.float32)
        return out[:B, :meta["out_size"]]

    fwd_jit = jax.jit(fwd)
    return lambda x: fwd_jit(x, prep)


def pallas_forward(x, params, eps=1e-5):
    return make_forward(params, eps=eps)(x)


# Pure-JAX float32 reference (NCHW, lax.conv) for correctness checking.
def reference_forward(x, params, eps=1e-5):
    B, S, IN = x.shape
    h = x.reshape(B * S, IN) @ params["emb_w"] + params["emb_b"]
    h = h.reshape(B, S, -1)[:, None, :, :]              # (B, 1, S, E)  NCHW
    for (w, b, g, bt) in params["conv_layers"]:
        h = jax.lax.conv_general_dilated(
            h, w, window_strides=(2, 2), padding=((1, 1), (1, 1)),
            dimension_numbers=("NCHW", "OIHW", "NCHW"))
        h = h + b[None, :, None, None]
        mu = jnp.mean(h, axis=(0, 2, 3), keepdims=True)
        var = jnp.mean((h - mu) ** 2, axis=(0, 2, 3), keepdims=True)
        h = g[None, :, None, None] * (h - mu) * jax.lax.rsqrt(var + eps) \
            + bt[None, :, None, None]
        h = jnp.maximum(h, 0.0)
    flat = h.reshape(B, -1)
    return flat @ params["lin_w"] + params["lin_b"]


if __name__ == "__main__":
    # Small shapes consistent with the module:
    # batch=2, sequence_length=8, input_size=16, embedding_dim=32,
    # fbase=8, output_size=10  ->  two conv blocks, ldim = 16*2*8 = 256.
    B, S, IN, E, FB, OUT = 2, 8, 16, 32, 8, 10

    key = jax.random.PRNGKey(0)
    k_params, k_x = jax.random.split(key)
    params = make_params(k_params, IN, OUT, S, E, FB)
    x = jax.random.normal(k_x, (B, S, IN), jnp.float32)

    fwd = make_forward(params)
    y = jax.block_until_ready(fwd(x))
    y_ref = jax.block_until_ready(reference_forward(x, params))

    assert y.shape == (B, OUT), y.shape
    # Tolerance accounts for bf16 MXU operands / bf16 inter-layer activations
    # versus the pure-float32 reference.
    assert jnp.allclose(y, y_ref, atol=1e-1, rtol=1e-1), \
        f"max err {jnp.max(jnp.abs(y - y_ref))}"
    print("KERNEL_OK")
</pallas_src>

<mosaic_0001>
module attributes {stable_mosaic.version = 11 : i64} {
  func.func @_matmul_bias_kernel(%arg0: i32, %arg1: i32, %arg2: memref<16x16xbf16, #tpu.memory_space<vmem>>, %arg3: memref<16x128xbf16, #tpu.memory_space<vmem>>, %arg4: memref<1x128xf32, #tpu.memory_space<vmem>>, %arg5: memref<16x128xbf16, #tpu.memory_space<vmem>>, %arg6: memref<16x128xf32, #tpu.memory_space<vmem>>) attributes {dimension_semantics = [#tpu.dimension_semantics<parallel>, #tpu.dimension_semantics<arbitrary>], iteration_bounds = array<i64: 1, 1>, scalar_prefetch = 0 : i64, scratch_operands = 1 : i64, tpu.core_type = #tpu.core_type<tc>, window_params = [{transform_indices = @transform_0, window_bounds = array<i64: 16, 16>}, {transform_indices = @transform_1, window_bounds = array<i64: 16, 128>}, {pipeline_mode = #tpu.pipeline_mode<synchronous>, transform_indices = @transform_2, window_bounds = array<i64: 1, 128>}, {transform_indices = @transform_3, window_bounds = array<i64: 16, 128>}]} {
    %c0_i32 = arith.constant 0 : i32
    %0 = arith.cmpi eq, %arg1, %c0_i32 : i32
    %1 = arith.extui %0 : i1 to i32
    %c0_i32_0 = arith.constant 0 : i32
    %2 = arith.cmpi ne, %1, %c0_i32_0 : i32
    scf.if %2 {
      %cst_10 = arith.constant 0.000000e+00 : f32
      %12 = vector.broadcast %cst_10 : f32 to vector<16x128xf32>
      %c0_11 = arith.constant 0 : index
      %c0_12 = arith.constant 0 : index
      %13 = vector.load %arg6[%c0_11, %c0_12] : memref<16x128xf32, #tpu.memory_space<vmem>>, vector<16x128xf32>
      tpu.vector_store %arg6[%c0_11, %c0_12], %12 {strides = array<i32>} : memref<16x128xf32, #tpu.memory_space<vmem>>, vector<16x128xf32>,
    } else {
    }
    %c0 = arith.constant 0 : index
    %c0_1 = arith.constant 0 : index
    %3 = vector.load %arg6[%c0, %c0_1] : memref<16x128xf32, #tpu.memory_space<vmem>>, vector<16x128xf32>
    %c0_2 = arith.constant 0 : index
    %c0_3 = arith.constant 0 : index
    %4 = vector.load %arg2[%c0_2, %c0_3] : memref<16x16xbf16, #tpu.memory_space<vmem>>, vector<16x16xbf16>
    %c0_4 = arith.constant 0 : index
    %c0_5 = arith.constant 0 : index
    %5 = vector.load %arg3[%c0_4, %c0_5] : memref<16x128xbf16, #tpu.memory_space<vmem>>, vector<16x128xbf16>
    %cst = arith.constant dense<0.000000e+00> : vector<16x128xf32>
    %6 = tpu.matmul %4, %5, %cst {dimension_numbers = #tpu.dot_dimension_numbers<[1], [0], [0], [1], [0, 0, 1, 1], [], []>} : vector<16x16xbf16>, vector<16x128xbf16>, vector<16x128xf32> -> vector<16x128xf32>
    %7 = arith.addf %3, %6 : vector<16x128xf32>
    %c0_6 = arith.constant 0 : index
    %c0_7 = arith.constant 0 : index
    %8 = vector.load %arg6[%c0_6, %c0_7] : memref<16x128xf32, #tpu.memory_space<vmem>>, vector<16x128xf32>
    tpu.vector_store %arg6[%c0_6, %c0_7], %7 {strides = array<i32>} : memref<16x128xf32, #tpu.memory_space<vmem>>, vector<16x128xf32>,
    %c0_i32_8 = arith.constant 0 : i32
    %9 = arith.cmpi eq, %arg1, %c0_i32_8 : i32
    %10 = arith.extui %9 : i1 to i32
    %c0_i32_9 = arith.constant 0 : i32
    %11 = arith.cmpi ne, %10, %c0_i32_9 : i32
    scf.if %11 {
      %c0_10 = arith.constant 0 : index
      %c0_11 = arith.constant 0 : index
      %12 = vector.load %arg6[%c0_10, %c0_11] : memref<16x128xf32, #tpu.memory_space<vmem>>, vector<16x128xf32>
      %c0_12 = arith.constant 0 : index
      %c0_13 = arith.constant 0 : index
      %13 = vector.load %arg4[%c0_12, %c0_13] : memref<1x128xf32, #tpu.memory_space<vmem>>, vector<1x128xf32>
      %14 = vector.broadcast %13 : vector<1x128xf32> to vector<16x128xf32>
      %15 = arith.addf %12, %14 : vector<16x128xf32>
      %16 = arith.truncf %15 : vector<16x128xf32> to vector<16x128xbf16>
      %c0_14 = arith.constant 0 : index
      %c0_15 = arith.constant 0 : index
      %17 = vector.load %arg5[%c0_14, %c0_15] : memref<16x128xbf16, #tpu.memory_space<vmem>>, vector<16x128xbf16>
      tpu.vector_store %arg5[%c0_14, %c0_15], %16 {strides = array<i32>} : memref<16x128xbf16, #tpu.memory_space<vmem>>, vector<16x128xbf16>,
    } else {
    }
    return
  }
  func.func @transform_0(%arg0: i32, %arg1: i32) -> (i32, i32) {
    %c0_i32 = arith.constant 0 : i32
    return %arg0, %arg1 : i32, i32
  }
  func.func @transform_1(%arg0: i32, %arg1: i32) -> (i32, i32) {
    %c0_i32 = arith.constant 0 : i32
    %c0_i32_0 = arith.constant 0 : i32
    return %arg1, %c0_i32 : i32, i32
  }
  func.func @transform_2(%arg0: i32, %arg1: i32) -> (i32, i32) {
    %c0_i32 = arith.constant 0 : i32
    %c0_i32_0 = arith.constant 0 : i32
    %c0_i32_1 = arith.constant 0 : i32
    return %c0_i32, %c0_i32_0 : i32, i32
  }
  func.func @transform_3(%arg0: i32, %arg1: i32) -> (i32, i32) {
    %c0_i32 = arith.constant 0 : i32
    %c0_i32_0 = arith.constant 0 : i32
    return %arg0, %c0_i32 : i32, i32
  }
}

module attributes {stable_mosaic.version = 11 : i64} {
  func.func @_conv_matmul_stats_kernel(%arg0: i32, %arg1: i32, %arg2: memref<128x16xbf16, #tpu.memory_space<vmem>>, %arg3: memref<16x128xbf16, #tpu.memory_space<vmem>>, %arg4: memref<128x128xbf16, #tpu.memory_space<vmem>>, %arg5: memref<1x128xf32, #tpu.memory_space<vmem>>, %arg6: memref<1x128xf32, #tpu.memory_space<vmem>>, %arg7: memref<128x128xf32, #tpu.memory_space<vmem>>) attributes {dimension_semantics = [#tpu.dimension_semantics<arbitrary>, #tpu.dimension_semantics<arbitrary>], iteration_bounds = array<i64: 1, 1>, scalar_prefetch = 0 : i64, scratch_operands = 1 : i64, tpu.core_type = #tpu.core_type<tc>, window_params = [{transform_indices = @transform_0, window_bounds = array<i64: 128, 16>}, {transform_indices = @transform_1, window_bounds = array<i64: 16, 128>}, {transform_indices = @transform_2, window_bounds = array<i64: 128, 128>}, {pipeline_mode = #tpu.pipeline_mode<synchronous>, transform_indices = @transform_3, window_bounds = array<i64: 1, 128>}, {pipeline_mode = #tpu.pipeline_mode<synchronous>, transform_indices = @transform_4, window_bounds = array<i64: 1, 128>}]} {
    %c0_i32 = arith.constant 0 : i32
    %0 = arith.cmpi eq, %arg0, %c0_i32 : i32
    %c0_i32_0 = arith.constant 0 : i32
    %1 = arith.cmpi eq, %arg1, %c0_i32_0 : i32
    %2 = arith.andi %0, %1 : i1
    %3 = arith.extui %2 : i1 to i32
    %c0_i32_1 = arith.constant 0 : i32
    %4 = arith.cmpi ne, %3, %c0_i32_1 : i32
    scf.if %4 {
      %cst_13 = arith.constant 0.000000e+00 : f32
      %17 = vector.broadcast %cst_13 : f32 to vector<1x128xf32>
      %c0_14 = arith.constant 0 : index
      %c0_15 = arith.constant 0 : index
      %18 = vector.load %arg5[%c0_14, %c0_15] : memref<1x128xf32, #tpu.memory_space<vmem>>, vector<1x128xf32>
      tpu.vector_store %arg5[%c0_14, %c0_15], %17 {strides = array<i32>} : memref<1x128xf32, #tpu.memory_space<vmem>>, vector<1x128xf32>,
      %cst_16 = arith.constant 0.000000e+00 : f32
      %19 = vector.broadcast %cst_16 : f32 to vector<1x128xf32>
      %c0_17 = arith.constant 0 : index
      %c0_18 = arith.constant 0 : index
      %20 = vector.load %arg6[%c0_17, %c0_18] : memref<1x128xf32, #tpu.memory_space<vmem>>, vector<1x128xf32>
      tpu.vector_store %arg6[%c0_17, %c0_18], %19 {strides = array<i32>} : memref<1x128xf32, #tpu.memory_space<vmem>>, vector<1x128xf32>,
    } else {
    }
    %c0_i32_2 = arith.constant 0 : i32
    %5 = arith.cmpi eq, %arg1, %c0_i32_2 : i32
    %6 = arith.extui %5 : i1 to i32
    %c0_i32_3 = arith.constant 0 : i32
    %7 = arith.cmpi ne, %6, %c0_i32_3 : i32
    scf.if %7 {
      %cst_13 = arith.constant 0.000000e+00 : f32
      %17 = vector.broadcast %cst_13 : f32 to vector<128x128xf32>
      %c0_14 = arith.constant 0 : index
      %c0_15 = arith.constant 0 : index
      %18 = vector.load %arg7[%c0_14, %c0_15] : memref<128x128xf32, #tpu.memory_space<vmem>>, vector<128x128xf32>
      tpu.vector_store %arg7[%c0_14, %c0_15], %17 {strides = array<i32>} : memref<128x128xf32, #tpu.memory_space<vmem>>, vector<128x128xf32>,
    } else {
    }
    %c0 = arith.constant 0 : index
    %c0_4 = arith.constant 0 : index
    %8 = vector.load %arg7[%c0, %c0_4] : memref<128x128xf32, #tpu.memory_space<vmem>>, vector<128x128xf32>
    %c0_5 = arith.constant 0 : index
    %c0_6 = arith.constant 0 : index
    %9 = vector.load %arg2[%c0_5, %c0_6] : memref<128x16xbf16, #tpu.memory_space<vmem>>, vector<128x16xbf16>
    %c0_7 = arith.constant 0 : index
    %c0_8 = arith.constant 0 : index
    %10 = vector.load %arg3[%c0_7, %c0_8] : memref<16x128xbf16, #tpu.memory_space<vmem>>, vector<16x128xbf16>
    %cst = arith.constant dense<0.000000e+00> : vector<128x128xf32>
    %11 = tpu.matmul %9, %10, %cst {dimension_numbers = #tpu.dot_dimension_numbers<[1], [0], [0], [1], [0, 0, 1, 1], [], []>} : vector<128x16xbf16>, vector<16x128xbf16>, vector<128x128xf32> -> vector<128x128xf32>
    %12 = arith.addf %8, %11 : vector<128x128xf32>
    %c0_9 = arith.constant 0 : index
    %c0_10 = arith.constant 0 : index
    %13 = vector.load %arg7[%c0_9, %c0_10] : memref<128x128xf32, #tpu.memory_space<vmem>>, vector<128x128xf32>
    tpu.vector_store %arg7[%c0_9, %c0_10], %12 {strides = array<i32>} : memref<128x128xf32, #tpu.memory_space<vmem>>, vector<128x128xf32>,
    %c0_i32_11 = arith.constant 0 : i32
    %14 = arith.cmpi eq, %arg1, %c0_i32_11 : i32
    %15 = arith.extui %14 : i1 to i32
    %c0_i32_12 = arith.constant 0 : i32
    %16 = arith.cmpi ne, %15, %c0_i32_12 : i32
    scf.if %16 {
      %c0_13 = arith.constant 0 : index
      %c0_14 = arith.constant 0 : index
      %17 = vector.load %arg7[%c0_13, %c0_14] : memref<128x128xf32, #tpu.memory_space<vmem>>, vector<128x128xf32>
      %18 = arith.truncf %17 : vector<128x128xf32> to vector<128x128xbf16>
      %c0_15 = arith.constant 0 : index
      %c0_16 = arith.constant 0 : index
      %19 = vector.load %arg4[%c0_15, %c0_16] : memref<128x128xbf16, #tpu.memory_space<vmem>>, vector<128x128xbf16>
      tpu.vector_store %arg4[%c0_15, %c0_16], %18 {strides = array<i32>} : memref<128x128xbf16, #tpu.memory_space<vmem>>, vector<128x128xbf16>,
      %c0_17 = arith.constant 0 : index
      %c0_18 = arith.constant 0 : index
      %20 = vector.load %arg5[%c0_17, %c0_18] : memref<1x128xf32, #tpu.memory_space<vmem>>, vector<1x128xf32>
      %cst_19 = arith.constant dense<0.000000e+00> : vector<128xf32>
      %21 = vector.multi_reduction <add>, %17, %cst_19 [0] : vector<128x128xf32> to vector<128xf32>
      %22 = vector.shape_cast %21 : vector<128xf32> to vector<1x128xf32>
      %23 = arith.addf %20, %22 : vector<1x128xf32>
      %c0_20 = arith.constant 0 : index
      %c0_21 = arith.constant 0 : index
      %24 = vector.load %arg5[%c0_20, %c0_21] : memref<1x128xf32, #tpu.memory_space<vmem>>, vector<1x128xf32>
      tpu.vector_store %arg5[%c0_20, %c0_21], %23 {strides = array<i32>} : memref<1x128xf32, #tpu.memory_space<vmem>>, vector<1x128xf32>,
      %c0_22 = arith.constant 0 : index
      %c0_23 = arith.constant 0 : index
      %25 = vector.load %arg6[%c0_22, %c0_23] : memref<1x128xf32, #tpu.memory_space<vmem>>, vector<1x128xf32>
      %26 = arith.mulf %17, %17 : vector<128x128xf32>
      %cst_24 = arith.constant dense<0.000000e+00> : vector<128xf32>
      %27 = vector.multi_reduction <add>, %26, %cst_24 [0] : vector<128x128xf32> to vector<128xf32>
      %28 = vector.shape_cast %27 : vector<128xf32> to vector<1x128xf32>
      %29 = arith.addf %25, %28 : vector<1x128xf32>
      %c0_25 = arith.constant 0 : index
      %c0_26 = arith.constant 0 : index
      %30 = vector.load %arg6[%c0_25, %c0_26] : memref<1x128xf32, #tpu.memory_space<vmem>>, vector<1x128xf32>
      tpu.vector_store %arg6[%c0_25, %c0_26], %29 {strides = array<i32>} : memref<1x128xf32, #tpu.memory_space<vmem>>, vector<1x128xf32>,
    } else {
    }
    return
  }
  func.func @transform_0(%arg0: i32, %arg1: i32) -> (i32, i32) {
    %c0_i32 = arith.constant 0 : i32
    return %arg0, %arg1 : i32, i32
  }
  func.func @transform_1(%arg0: i32, %arg1: i32) -> (i32, i32) {
    %c0_i32 = arith.constant 0 : i32
    %c0_i32_0 = arith.constant 0 : i32
    return %arg1, %c0_i32 : i32, i32
  }
  func.func @transform_2(%arg0: i32, %arg1: i32) -> (i32, i32) {
    %c0_i32 = arith.constant 0 : i32
    %c0_i32_0 = arith.constant 0 : i32
    return %arg0, %c0_i32 : i32, i32
  }
  func.func @transform_3(%arg0: i32, %arg1: i32) -> (i32, i32) {
    %c0_i32 = arith.constant 0 : i32
    %c0_i32_0 = arith.constant 0 : i32
    %c0_i32_1 = arith.constant 0 : i32
    return %c0_i32, %c0_i32_0 : i32, i32
  }
  func.func @transform_4(%arg0: i32, %arg1: i32) -> (i32, i32) {
    %c0_i32 = arith.constant 0 : i32
    %c0_i32_0 = arith.constant 0 : i32
    %c0_i32_1 = arith.constant 0 : i32
    return %c0_i32, %c0_i32_0 : i32, i32
  }
}

module attributes {stable_mosaic.version = 11 : i64} {
  func.func @_bn_relu_kernel(%arg0: i32, %arg1: memref<128x128xbf16, #tpu.memory_space<vmem>>, %arg2: memref<1x128xf32, #tpu.memory_space<vmem>>, %arg3: memref<1x128xf32, #tpu.memory_space<vmem>>, %arg4: memref<1x128xf32, #tpu.memory_space<vmem>>, %arg5: memref<1x128xf32, #tpu.memory_space<vmem>>, %arg6: memref<128x128xbf16, #tpu.memory_space<vmem>>) attributes {dimension_semantics = [#tpu.dimension_semantics<parallel>], iteration_bounds = array<i64: 1>, scalar_prefetch = 0 : i64, scratch_operands = 0 : i64, tpu.core_type = #tpu.core_type<tc>, window_params = [{transform_indices = @transform_0, window_bounds = array<i64: 128, 128>}, {pipeline_mode = #tpu.pipeline_mode<synchronous>, transform_indices = @transform_1, window_bounds = array<i64: 1, 128>}, {pipeline_mode = #tpu.pipeline_mode<synchronous>, transform_indices = @transform_2, window_bounds = array<i64: 1, 128>}, {pipeline_mode = #tpu.pipeline_mode<synchronous>, transform_indices = @transform_3, window_bounds = array<i64: 1, 128>}, {pipeline_mode = #tpu.pipeline_mode<synchronous>, transform_indices = @transform_4, window_bounds = array<i64: 1, 128>}, {transform_indices = @transform_5, window_bounds = array<i64: 128, 128>}]} {
    %c0 = arith.constant 0 : index
    %c0_0 = arith.constant 0 : index
    %0 = vector.load %arg2[%c0, %c0_0] : memref<1x128xf32, #tpu.memory_space<vmem>>, vector<1x128xf32>
    %cst = arith.constant 7.812500e-03 : f32
    %1 = vector.broadcast %cst : f32 to vector<1x128xf32>
    %2 = arith.mulf %0, %1 : vector<1x128xf32>
    %c0_1 = arith.constant 0 : index
    %c0_2 = arith.constant 0 : index
    %3 = vector.load %arg3[%c0_1, %c0_2] : memref<1x128xf32, #tpu.memory_space<vmem>>, vector<1x128xf32>
    %cst_3 = arith.constant 7.812500e-03 : f32
    %4 = vector.broadcast %cst_3 : f32 to vector<1x128xf32>
    %5 = arith.mulf %3, %4 : vector<1x128xf32>
    %6 = arith.mulf %2, %2 : vector<1x128xf32>
    %7 = arith.subf %5, %6 : vector<1x128xf32>
    %cst_4 = arith.constant 0.000000e+00 : f32
    %8 = vector.broadcast %cst_4 : f32 to vector<1x128xf32>
    %9 = arith.maximumf %7, %8 : vector<1x128xf32>
    %c0_5 = arith.constant 0 : index
    %c0_6 = arith.constant 0 : index
    %10 = vector.load %arg4[%c0_5, %c0_6] : memref<1x128xf32, #tpu.memory_space<vmem>>, vector<1x128xf32>
    %cst_7 = arith.constant 9.99999974E-6 : f32
    %11 = vector.broadcast %cst_7 : f32 to vector<1x128xf32>
    %12 = arith.addf %9, %11 : vector<1x128xf32>
    %13 = math.rsqrt %12 : vector<1x128xf32>
    %14 = arith.mulf %10, %13 : vector<1x128xf32>
    %c0_8 = arith.constant 0 : index
    %c0_9 = arith.constant 0 : index
    %15 = vector.load %arg5[%c0_8, %c0_9] : memref<1x128xf32, #tpu.memory_space<vmem>>, vector<1x128xf32>
    %16 = arith.mulf %2, %14 : vector<1x128xf32>
    %17 = arith.subf %15, %16 : vector<1x128xf32>
    %c0_10 = arith.constant 0 : index
    %c0_11 = arith.constant 0 : index
    %18 = vector.load %arg1[%c0_10, %c0_11] : memref<128x128xbf16, #tpu.memory_space<vmem>>, vector<128x128xbf16>
    %19 = arith.extf %18 : vector<128x128xbf16> to vector<128x128xf32>
    %20 = vector.broadcast %14 : vector<1x128xf32> to vector<128x128xf32>
    %21 = arith.mulf %19, %20 : vector<128x128xf32>
    %22 = vector.broadcast %17 : vector<1x128xf32> to vector<128x128xf32>
    %23 = arith.addf %21, %22 : vector<128x128xf32>
    %cst_12 = arith.constant 0.000000e+00 : f32
    %24 = vector.broadcast %cst_12 : f32 to vector<128x128xf32>
    %25 = arith.maximumf %23, %24 : vector<128x128xf32>
    %26 = arith.truncf %25 : vector<128x128xf32> to vector<128x128xbf16>
    %c0_13 = arith.constant 0 : index
    %c0_14 = arith.constant 0 : index
    %27 = vector.load %arg6[%c0_13, %c0_14] : memref<128x128xbf16, #tpu.memory_space<vmem>>, vector<128x128xbf16>
    tpu.vector_store %arg6[%c0_13, %c0_14], %26 {strides = array<i32>} : memref<128x128xbf16, #tpu.memory_space<vmem>>, vector<128x128xbf16>,
    return
  }
  func.func @transform_0(%arg0: i32) -> (i32, i32) {
    %c0_i32 = arith.constant 0 : i32
    %c0_i32_0 = arith.constant 0 : i32
    return %arg0, %c0_i32 : i32, i32
  }
  func.func @transform_1(%arg0: i32) -> (i32, i32) {
    %c0_i32 = arith.constant 0 : i32
    %c0_i32_0 = arith.constant 0 : i32
    %c0_i32_1 = arith.constant 0 : i32
    return %c0_i32, %c0_i32_0 : i32, i32
  }
  func.func @transform_2(%arg0: i32) -> (i32, i32) {
    %c0_i32 = arith.constant 0 : i32
    %c0_i32_0 = arith.constant 0 : i32
    %c0_i32_1 = arith.constant 0 : i32
    return %c0_i32, %c0_i32_0 : i32, i32
  }
  func.func @transform_3(%arg0: i32) -> (i32, i32) {
    %c0_i32 = arith.constant 0 : i32
    %c0_i32_0 = arith.constant 0 : i32
    %c0_i32_1 = arith.constant 0 : i32
    return %c0_i32, %c0_i32_0 : i32, i32
  }
  func.func @transform_4(%arg0: i32) -> (i32, i32) {
    %c0_i32 = arith.constant 0 : i32
    %c0_i32_0 = arith.constant 0 : i32
    %c0_i32_1 = arith.constant 0 : i32
    return %c0_i32, %c0_i32_0 : i32, i32
  }
  func.func @transform_5(%arg0: i32) -> (i32, i32) {
    %c0_i32 = arith.constant 0 : i32
    %c0_i32_0 = arith.constant 0 : i32
    return %arg0, %c0_i32 : i32, i32
  }
}

module attributes {stable_mosaic.version = 11 : i64} {
  func.func @_conv_matmul_stats_kernel(%arg0: i32, %arg1: i32, %arg2: memref<32x128xbf16, #tpu.memory_space<vmem>>, %arg3: memref<128x128xbf16, #tpu.memory_space<vmem>>, %arg4: memref<32x128xbf16, #tpu.memory_space<vmem>>, %arg5: memref<1x128xf32, #tpu.memory_space<vmem>>, %arg6: memref<1x128xf32, #tpu.memory_space<vmem>>, %arg7: memref<32x128xf32, #tpu.memory_space<vmem>>) attributes {dimension_semantics = [#tpu.dimension_semantics<arbitrary>, #tpu.dimension_semantics<arbitrary>], iteration_bounds = array<i64: 1, 1>, scalar_prefetch = 0 : i64, scratch_operands = 1 : i64, tpu.core_type = #tpu.core_type<tc>, window_params = [{transform_indices = @transform_0, window_bounds = array<i64: 32, 128>}, {transform_indices = @transform_1, window_bounds = array<i64: 128, 128>}, {transform_indices = @transform_2, window_bounds = array<i64: 32, 128>}, {pipeline_mode = #tpu.pipeline_mode<synchronous>, transform_indices = @transform_3, window_bounds = array<i64: 1, 128>}, {pipeline_mode = #tpu.pipeline_mode<synchronous>, transform_indices = @transform_4, window_bounds = array<i64: 1, 128>}]} {
    %c0_i32 = arith.constant 0 : i32
    %0 = arith.cmpi eq, %arg0, %c0_i32 : i32
    %c0_i32_0 = arith.constant 0 : i32
    %1 = arith.cmpi eq, %arg1, %c0_i32_0 : i32
    %2 = arith.andi %0, %1 : i1
    %3 = arith.extui %2 : i1 to i32
    %c0_i32_1 = arith.constant 0 : i32
    %4 = arith.cmpi ne, %3, %c0_i32_1 : i32
    scf.if %4 {
      %cst_13 = arith.constant 0.000000e+00 : f32
      %17 = vector.broadcast %cst_13 : f32 to vector<1x128xf32>
      %c0_14 = arith.constant 0 : index
      %c0_15 = arith.constant 0 : index
      %18 = vector.load %arg5[%c0_14, %c0_15] : memref<1x128xf32, #tpu.memory_space<vmem>>, vector<1x128xf32>
      tpu.vector_store %arg5[%c0_14, %c0_15], %17 {strides = array<i32>} : memref<1x128xf32, #tpu.memory_space<vmem>>, vector<1x128xf32>,
      %cst_16 = arith.constant 0.000000e+00 : f32
      %19 = vector.broadcast %cst_16 : f32 to vector<1x128xf32>
      %c0_17 = arith.constant 0 : index
      %c0_18 = arith.constant 0 : index
      %20 = vector.load %arg6[%c0_17, %c0_18] : memref<1x128xf32, #tpu.memory_space<vmem>>, vector<1x128xf32>
      tpu.vector_store %arg6[%c0_17, %c0_18], %19 {strides = array<i32>} : memref<1x128xf32, #tpu.memory_space<vmem>>, vector<1x128xf32>,
    } else {
    }
    %c0_i32_2 = arith.constant 0 : i32
    %5 = arith.cmpi eq, %arg1, %c0_i32_2 : i32
    %6 = arith.extui %5 : i1 to i32
    %c0_i32_3 = arith.constant 0 : i32
    %7 = arith.cmpi ne, %6, %c0_i32_3 : i32
    scf.if %7 {
      %cst_13 = arith.constant 0.000000e+00 : f32
      %17 = vector.broadcast %cst_13 : f32 to vector<32x128xf32>
      %c0_14 = arith.constant 0 : index
      %c0_15 = arith.constant 0 : index
      %18 = vector.load %arg7[%c0_14, %c0_15] : memref<32x128xf32, #tpu.memory_space<vmem>>, vector<32x128xf32>
      tpu.vector_store %arg7[%c0_14, %c0_15], %17 {strides = array<i32>} : memref<32x128xf32, #tpu.memory_space<vmem>>, vector<32x128xf32>,
    } else {
    }
    %c0 = arith.constant 0 : index
    %c0_4 = arith.constant 0 : index
    %8 = vector.load %arg7[%c0, %c0_4] : memref<32x128xf32, #tpu.memory_space<vmem>>, vector<32x128xf32>
    %c0_5 = arith.constant 0 : index
    %c0_6 = arith.constant 0 : index
    %9 = vector.load %arg2[%c0_5, %c0_6] : memref<32x128xbf16, #tpu.memory_space<vmem>>, vector<32x128xbf16>
    %c0_7 = arith.constant 0 : index
    %c0_8 = arith.constant 0 : index
    %10 = vector.load %arg3[%c0_7, %c0_8] : memref<128x128xbf16, #tpu.memory_space<vmem>>, vector<128x128xbf16>
    %cst = arith.constant dense<0.000000e+00> : vector<32x128xf32>
    %11 = tpu.matmul %9, %10, %cst {dimension_numbers = #tpu.dot_dimension_numbers<[1], [0], [0], [1], [0, 0, 1, 1], [], []>} : vector<32x128xbf16>, vector<128x128xbf16>, vector<32x128xf32> -> vector<32x128xf32>
    %12 = arith.addf %8, %11 : vector<32x128xf32>
    %c0_9 = arith.constant 0 : index
    %c0_10 = arith.constant 0 : index
    %13 = vector.load %arg7[%c0_9, %c0_10] : memref<32x128xf32, #tpu.memory_space<vmem>>, vector<32x128xf32>
    tpu.vector_store %arg7[%c0_9, %c0_10], %12 {strides = array<i32>} : memref<32x128xf32, #tpu.memory_space<vmem>>, vector<32x128xf32>,
    %c0_i32_11 = arith.constant 0 : i32
    %14 = arith.cmpi eq, %arg1, %c0_i32_11 : i32
    %15 = arith.extui %14 : i1 to i32
    %c0_i32_12 = arith.constant 0 : i32
    %16 = arith.cmpi ne, %15, %c0_i32_12 : i32
    scf.if %16 {
      %c0_13 = arith.constant 0 : index
      %c0_14 = arith.constant 0 : index
      %17 = vector.load %arg7[%c0_13, %c0_14] : memref<32x128xf32, #tpu.memory_space<vmem>>, vector<32x128xf32>
      %18 = arith.truncf %17 : vector<32x128xf32> to vector<32x128xbf16>
      %c0_15 = arith.constant 0 : index
      %c0_16 = arith.constant 0 : index
      %19 = vector.load %arg4[%c0_15, %c0_16] : memref<32x128xbf16, #tpu.memory_space<vmem>>, vector<32x128xbf16>
      tpu.vector_store %arg4[%c0_15, %c0_16], %18 {strides = array<i32>} : memref<32x128xbf16, #tpu.memory_space<vmem>>, vector<32x128xbf16>,
      %c0_17 = arith.constant 0 : index
      %c0_18 = arith.constant 0 : index
      %20 = vector.load %arg5[%c0_17, %c0_18] : memref<1x128xf32, #tpu.memory_space<vmem>>, vector<1x128xf32>
      %cst_19 = arith.constant dense<0.000000e+00> : vector<128xf32>
      %21 = vector.multi_reduction <add>, %17, %cst_19 [0] : vector<32x128xf32> to vector<128xf32>
      %22 = vector.shape_cast %21 : vector<128xf32> to vector<1x128xf32>
      %23 = arith.addf %20, %22 : vector<1x128xf32>
      %c0_20 = arith.constant 0 : index
      %c0_21 = arith.constant 0 : index
      %24 = vector.load %arg5[%c0_20, %c0_21] : memref<1x128xf32, #tpu.memory_space<vmem>>, vector<1x128xf32>
      tpu.vector_store %arg5[%c0_20, %c0_21], %23 {strides = array<i32>} : memref<1x128xf32, #tpu.memory_space<vmem>>, vector<1x128xf32>,
      %c0_22 = arith.constant 0 : index
      %c0_23 = arith.constant 0 : index
      %25 = vector.load %arg6[%c0_22, %c0_23] : memref<1x128xf32, #tpu.memory_space<vmem>>, vector<1x128xf32>
      %26 = arith.mulf %17, %17 : vector<32x128xf32>
      %cst_24 = arith.constant dense<0.000000e+00> : vector<128xf32>
      %27 = vector.multi_reduction <add>, %26, %cst_24 [0] : vector<32x128xf32> to vector<128xf32>
      %28 = vector.shape_cast %27 : vector<128xf32> to vector<1x128xf32>
      %29 = arith.addf %25, %28 : vector<1x128xf32>
      %c0_25 = arith.constant 0 : index
      %c0_26 = arith.constant 0 : index
      %30 = vector.load %arg6[%c0_25, %c0_26] : memref<1x128xf32, #tpu.memory_space<vmem>>, vector<1x128xf32>
      tpu.vector_store %arg6[%c0_25, %c0_26], %29 {strides = array<i32>} : memref<1x128xf32, #tpu.memory_space<vmem>>, vector<1x128xf32>,
    } else {
    }
    return
  }
  func.func @transform_0(%arg0: i32, %arg1: i32) -> (i32, i32) {
    %c0_i32 = arith.constant 0 : i32
    return %arg0, %arg1 : i32, i32
  }
  func.func @transform_1(%arg0: i32, %arg1: i32) -> (i32, i32) {
    %c0_i32 = arith.constant 0 : i32
    %c0_i32_0 = arith.constant 0 : i32
    return %arg1, %c0_i32 : i32, i32
  }
  func.func @transform_2(%arg0: i32, %arg1: i32) -> (i32, i32) {
    %c0_i32 = arith.constant 0 : i32
    %c0_i32_0 = arith.constant 0 : i32
    return %arg0, %c0_i32 : i32, i32
  }
  func.func @transform_3(%arg0: i32, %arg1: i32) -> (i32, i32) {
    %c0_i32 = arith.constant 0 : i32
    %c0_i32_0 = arith.constant 0 : i32
    %c0_i32_1 = arith.constant 0 : i32
    return %c0_i32, %c0_i32_0 : i32, i32
  }
  func.func @transform_4(%arg0: i32, %arg1: i32) -> (i32, i32) {
    %c0_i32 = arith.constant 0 : i32
    %c0_i32_0 = arith.constant 0 : i32
    %c0_i32_1 = arith.constant 0 : i32
    return %c0_i32, %c0_i32_0 : i32, i32
  }
}

module attributes {stable_mosaic.version = 11 : i64} {
  func.func @_bn_relu_kernel(%arg0: i32, %arg1: memref<32x128xbf16, #tpu.memory_space<vmem>>, %arg2: memref<1x128xf32, #tpu.memory_space<vmem>>, %arg3: memref<1x128xf32, #tpu.memory_space<vmem>>, %arg4: memref<1x128xf32, #tpu.memory_space<vmem>>, %arg5: memref<1x128xf32, #tpu.memory_space<vmem>>, %arg6: memref<32x128xbf16, #tpu.memory_space<vmem>>) attributes {dimension_semantics = [#tpu.dimension_semantics<parallel>], iteration_bounds = array<i64: 1>, scalar_prefetch = 0 : i64, scratch_operands = 0 : i64, tpu.core_type = #tpu.core_type<tc>, window_params = [{transform_indices = @transform_0, window_bounds = array<i64: 32, 128>}, {pipeline_mode = #tpu.pipeline_mode<synchronous>, transform_indices = @transform_1, window_bounds = array<i64: 1, 128>}, {pipeline_mode = #tpu.pipeline_mode<synchronous>, transform_indices = @transform_2, window_bounds = array<i64: 1, 128>}, {pipeline_mode = #tpu.pipeline_mode<synchronous>, transform_indices = @transform_3, window_bounds = array<i64: 1, 128>}, {pipeline_mode = #tpu.pipeline_mode<synchronous>, transform_indices = @transform_4, window_bounds = array<i64: 1, 128>}, {transform_indices = @transform_5, window_bounds = array<i64: 32, 128>}]} {
    %c0 = arith.constant 0 : index
    %c0_0 = arith.constant 0 : index
    %0 = vector.load %arg2[%c0, %c0_0] : memref<1x128xf32, #tpu.memory_space<vmem>>, vector<1x128xf32>
    %cst = arith.constant 3.125000e-02 : f32
    %1 = vector.broadcast %cst : f32 to vector<1x128xf32>
    %2 = arith.mulf %0, %1 : vector<1x128xf32>
    %c0_1 = arith.constant 0 : index
    %c0_2 = arith.constant 0 : index
    %3 = vector.load %arg3[%c0_1, %c0_2] : memref<1x128xf32, #tpu.memory_space<vmem>>, vector<1x128xf32>
    %cst_3 = arith.constant 3.125000e-02 : f32
    %4 = vector.broadcast %cst_3 : f32 to vector<1x128xf32>
    %5 = arith.mulf %3, %4 : vector<1x128xf32>
    %6 = arith.mulf %2, %2 : vector<1x128xf32>
    %7 = arith.subf %5, %6 : vector<1x128xf32>
    %cst_4 = arith.constant 0.000000e+00 : f32
    %8 = vector.broadcast %cst_4 : f32 to vector<1x128xf32>
    %9 = arith.maximumf %7, %8 : vector<1x128xf32>
    %c0_5 = arith.constant 0 : index
    %c0_6 = arith.constant 0 : index
    %10 = vector.load %arg4[%c0_5, %c0_6] : memref<1x128xf32, #tpu.memory_space<vmem>>, vector<1x128xf32>
    %cst_7 = arith.constant 9.99999974E-6 : f32
    %11 = vector.broadcast %cst_7 : f32 to vector<1x128xf32>
    %12 = arith.addf %9, %11 : vector<1x128xf32>
    %13 = math.rsqrt %12 : vector<1x128xf32>
    %14 = arith.mulf %10, %13 : vector<1x128xf32>
    %c0_8 = arith.constant 0 : index
    %c0_9 = arith.constant 0 : index
    %15 = vector.load %arg5[%c0_8, %c0_9] : memref<1x128xf32, #tpu.memory_space<vmem>>, vector<1x128xf32>
    %16 = arith.mulf %2, %14 : vector<1x128xf32>
    %17 = arith.subf %15, %16 : vector<1x128xf32>
    %c0_10 = arith.constant 0 : index
    %c0_11 = arith.constant 0 : index
    %18 = vector.load %arg1[%c0_10, %c0_11] : memref<32x128xbf16, #tpu.memory_space<vmem>>, vector<32x128xbf16>
    %19 = arith.extf %18 : vector<32x128xbf16> to vector<32x128xf32>
    %20 = vector.broadcast %14 : vector<1x128xf32> to vector<32x128xf32>
    %21 = arith.mulf %19, %20 : vector<32x128xf32>
    %22 = vector.broadcast %17 : vector<1x128xf32> to vector<32x128xf32>
    %23 = arith.addf %21, %22 : vector<32x128xf32>
    %cst_12 = arith.constant 0.000000e+00 : f32
    %24 = vector.broadcast %cst_12 : f32 to vector<32x128xf32>
    %25 = arith.maximumf %23, %24 : vector<32x128xf32>
    %26 = arith.truncf %25 : vector<32x128xf32> to vector<32x128xbf16>
    %c0_13 = arith.constant 0 : index
    %c0_14 = arith.constant 0 : index
    %27 = vector.load %arg6[%c0_13, %c0_14] : memref<32x128xbf16, #tpu.memory_space<vmem>>, vector<32x128xbf16>
    tpu.vector_store %arg6[%c0_13, %c0_14], %26 {strides = array<i32>} : memref<32x128xbf16, #tpu.memory_space<vmem>>, vector<32x128xbf16>,
    return
  }
  func.func @transform_0(%arg0: i32) -> (i32, i32) {
    %c0_i32 = arith.constant 0 : i32
    %c0_i32_0 = arith.constant 0 : i32
    return %arg0, %c0_i32 : i32, i32
  }
  func.func @transform_1(%arg0: i32) -> (i32, i32) {
    %c0_i32 = arith.constant 0 : i32
    %c0_i32_0 = arith.constant 0 : i32
    %c0_i32_1 = arith.constant 0 : i32
    return %c0_i32, %c0_i32_0 : i32, i32
  }
  func.func @transform_2(%arg0: i32) -> (i32, i32) {
    %c0_i32 = arith.constant 0 : i32
    %c0_i32_0 = arith.constant 0 : i32
    %c0_i32_1 = arith.constant 0 : i32
    return %c0_i32, %c0_i32_0 : i32, i32
  }
  func.func @transform_3(%arg0: i32) -> (i32, i32) {
    %c0_i32 = arith.constant 0 : i32
    %c0_i32_0 = arith.constant 0 : i32
    %c0_i32_1 = arith.constant 0 : i32
    return %c0_i32, %c0_i32_0 : i32, i32
  }
  func.func @transform_4(%arg0: i32) -> (i32, i32) {
    %c0_i32 = arith.constant 0 : i32
    %c0_i32_0 = arith.constant 0 : i32
    %c0_i32_1 = arith.constant 0 : i32
    return %c0_i32, %c0_i32_0 : i32, i32
  }
  func.func @transform_5(%arg0: i32) -> (i32, i32) {
    %c0_i32 = arith.constant 0 : i32
    %c0_i32_0 = arith.constant 0 : i32
    return %arg0, %c0_i32 : i32, i32
  }
}

module attributes {stable_mosaic.version = 11 : i64} {
  func.func @_matmul_bias_kernel(%arg0: i32, %arg1: i32, %arg2: memref<8x256xbf16, #tpu.memory_space<vmem>>, %arg3: memref<256x128xbf16, #tpu.memory_space<vmem>>, %arg4: memref<1x128xf32, #tpu.memory_space<vmem>>, %arg5: memref<8x128xf32, #tpu.memory_space<vmem>>, %arg6: memref<8x128xf32, #tpu.memory_space<vmem>>) attributes {dimension_semantics = [#tpu.dimension_semantics<parallel>, #tpu.dimension_semantics<arbitrary>], iteration_bounds = array<i64: 1, 1>, scalar_prefetch = 0 : i64, scratch_operands = 1 : i64, tpu.core_type = #tpu.core_type<tc>, window_params = [{transform_indices = @transform_0, window_bounds = array<i64: 8, 256>}, {transform_indices = @transform_1, window_bounds = array<i64: 256, 128>}, {pipeline_mode = #tpu.pipeline_mode<synchronous>, transform_indices = @transform_2, window_bounds = array<i64: 1, 128>}, {transform_indices = @transform_3, window_bounds = array<i64: 8, 128>}]} {
    %c0_i32 = arith.constant 0 : i32
    %0 = arith.cmpi eq, %arg1, %c0_i32 : i32
    %1 = arith.extui %0 : i1 to i32
    %c0_i32_0 = arith.constant 0 : i32
    %2 = arith.cmpi ne, %1, %c0_i32_0 : i32
    scf.if %2 {
      %cst_10 = arith.constant 0.000000e+00 : f32
      %12 = vector.broadcast %cst_10 : f32 to vector<8x128xf32>
      %c0_11 = arith.constant 0 : index
      %c0_12 = arith.constant 0 : index
      %13 = vector.load %arg6[%c0_11, %c0_12] : memref<8x128xf32, #tpu.memory_space<vmem>>, vector<8x128xf32>
      tpu.vector_store %arg6[%c0_11, %c0_12], %12 {strides = array<i32>} : memref<8x128xf32, #tpu.memory_space<vmem>>, vector<8x128xf32>,
    } else {
    }
    %c0 = arith.constant 0 : index
    %c0_1 = arith.constant 0 : index
    %3 = vector.load %arg6[%c0, %c0_1] : memref<8x128xf32, #tpu.memory_space<vmem>>, vector<8x128xf32>
    %c0_2 = arith.constant 0 : index
    %c0_3 = arith.constant 0 : index
    %4 = vector.load %arg2[%c0_2, %c0_3] : memref<8x256xbf16, #tpu.memory_space<vmem>>, vector<8x256xbf16>
    %c0_4 = arith.constant 0 : index
    %c0_5 = arith.constant 0 : index
    %5 = vector.load %arg3[%c0_4, %c0_5] : memref<256x128xbf16, #tpu.memory_space<vmem>>, vector<256x128xbf16>
    %cst = arith.constant dense<0.000000e+00> : vector<8x128xf32>
    %6 = tpu.matmul %4, %5, %cst {dimension_numbers = #tpu.dot_dimension_numbers<[1], [0], [0], [1], [0, 0, 1, 1], [], []>} : vector<8x256xbf16>, vector<256x128xbf16>, vector<8x128xf32> -> vector<8x128xf32>
    %7 = arith.addf %3, %6 : vector<8x128xf32>
    %c0_6 = arith.constant 0 : index
    %c0_7 = arith.constant 0 : index
    %8 = vector.load %arg6[%c0_6, %c0_7] : memref<8x128xf32, #tpu.memory_space<vmem>>, vector<8x128xf32>
    tpu.vector_store %arg6[%c0_6, %c0_7], %7 {strides = array<i32>} : memref<8x128xf32, #tpu.memory_space<vmem>>, vector<8x128xf32>,
    %c0_i32_8 = arith.constant 0 : i32
    %9 = arith.cmpi eq, %arg1, %c0_i32_8 : i32
    %10 = arith.extui %9 : i1 to i32
    %c0_i32_9 = arith.constant 0 : i32
    %11 = arith.cmpi ne, %10, %c0_i32_9 : i32
    scf.if %11 {
      %c0_10 = arith.constant 0 : index
      %c0_11 = arith.constant 0 : index
      %12 = vector.load %arg6[%c0_10, %c0_11] : memref<8x128xf32, #tpu.memory_space<vmem>>, vector<8x128xf32>
      %c0_12 = arith.constant 0 : index
      %c0_13 = arith.constant 0 : index
      %13 = vector.load %arg4[%c0_12, %c0_13] : memref<1x128xf32, #tpu.memory_space<vmem>>, vector<1x128xf32>
      %14 = vector.broadcast %13 : vector<1x128xf32> to vector<8x128xf32>
      %15 = arith.addf %12, %14 : vector<8x128xf32>
      %c0_14 = arith.constant 0 : index
      %c0_15 = arith.constant 0 : index
      %16 = vector.load %arg5[%c0_14, %c0_15] : memref<8x128xf32, #tpu.memory_space<vmem>>, vector<8x128xf32>
      tpu.vector_store %arg5[%c0_14, %c0_15], %15 {strides = array<i32>} : memref<8x128xf32, #tpu.memory_space<vmem>>, vector<8x128xf32>,
    } else {
    }
    return
  }
  func.func @transform_0(%arg0: i32, %arg1: i32) -> (i32, i32) {
    %c0_i32 = arith.constant 0 : i32
    return %arg0, %arg1 : i32, i32
  }
  func.func @transform_1(%arg0: i32, %arg1: i32) -> (i32, i32) {
    %c0_i32 = arith.constant 0 : i32
    %c0_i32_0 = arith.constant 0 : i32
    return %arg1, %c0_i32 : i32, i32
  }
  func.func @transform_2(%arg0: i32, %arg1: i32) -> (i32, i32) {
    %c0_i32 = arith.constant 0 : i32
    %c0_i32_0 = arith.constant 0 : i32
    %c0_i32_1 = arith.constant 0 : i32
    return %c0_i32, %c0_i32_0 : i32, i32
  }
  func.func @transform_3(%arg0: i32, %arg1: i32) -> (i32, i32) {
    %c0_i32 = arith.constant 0 : i32
    %c0_i32_0 = arith.constant 0 : i32
    return %arg0, %c0_i32 : i32, i32
  }
}

</mosaic_0001>

<llo_original>
// kernel: fwd.6
$region0: #{fwd.6}
  #allocation0 [shape = 'u32[]', space=smem, size = 0x4, offset = 0x4, fixed_abs, tag = 'smem constant byte address 0x4 - core index']
  #allocation1 [shape = 'u32[144,128]{1,0:T(1,128)}', space=vmem, size = 0x12000, scoped, tag = 'internal scratch']
  #allocation2 [shape = 'f32[16,128]{1,0:T(8,128)}', space=vmem, size = 0x2000, scoped, tag = 'scratch operand']
  %s0 = inlined_call_operand.vmem [shape: bf16[16,16], index: 0, kind: input, shape index: {}]
  %s1 = inlined_call_operand.vmem [shape: bf16[16,128], index: 1, kind: input, shape index: {}]
  %s2 = inlined_call_operand.vmem [shape: f32[1,128], index: 2, kind: input, shape index: {}]
  %s3 = inlined_call_operand.vmem [shape: bf16[16,128], index: 3, kind: output, shape index: {}]
  %s4 = sld [smem:[#allocation0]]
  $region30: #{fwd.6} parent=0
    _
  %s6 = ssub.s32 1, %s4
  %s7 = scalar_select 0, %s6, %s4
  // Predicated region
  $region2: #{fwd.6} parent=0 // pred_check
    _
  $region3: #{fwd.6} parent=0 // pred_check_branch
    %9 = sbr.rel (0) target = $region5
  $region4: #{fwd.6} parent=0 // pred_region
    _
  $region5: #{fwd.6} parent=0 // pred_fallthru
    _
  // Predicated region
  $region6: #{fwd.6} parent=0 // pred_check
    _
  $region7: #{fwd.6} parent=0 // pred_check_branch
    %11 = sbr.rel (0) target = $region9
  $region8: #{fwd.6} parent=0 // pred_region
    _
  $region9: #{fwd.6} parent=0 // pred_fallthru
    _
  // Predicated region
  $region10: #{fwd.6} parent=0 // pred_check
    _
  $region11: #{fwd.6} parent=0 // pred_check_branch
    %13 = sbr.rel (0) target = $region13
  $region12: #{fwd.6} parent=0 // pred_region
    _
  $region13: #{fwd.6} parent=0 // pred_fallthru
    _
  %p15 = scmp.eq.s32.totalorder 0, 0
  // Predicated region
  $region14: #{fwd.6} parent=0 // pred_check
    %p16 = pneg %p15
  $region15: #{fwd.6} parent=0 // pred_check_branch
    %18 = sbr.rel (%p16) target = $region17
  $region16: #{fwd.6} parent=0 // pred_region
    %19 = vst [vmem:[#allocation2] sm:$0xff] 0.0
    %20 = vst [vmem:[#allocation2 + $0x8] sm:$0xff] 0.0
  $region17: #{fwd.6} parent=0 // pred_fallthru
    _
  %v21 = vld [vmem:[#allocation2] sm:$0xff]
  %v22 = vld [vmem:[#allocation2 + $0x8] sm:$0xff]
  %v23 = vld [vmem:[%s0] sm:$0xf]
  %v24 = vld [vmem:[%s0 + $0x4] sm:$0xf]
  %v25 = vld [vmem:[%s1] sm:$0xf]
  %v26 = vld [vmem:[%s1 + $0x4] sm:$0xf]
  %v29 = vunpack.c.l.b16 %v23
  %v30 = vunpack.c.l.b16 %v24
  %v31 = vpack.c.b16 %v30, %v29
  %v34 = vunpack.c.l.b16 %v25
  %v35 = vunpack.c.l.b16 %v26
  %v36 = vpack.c.b16 %v35, %v34
  %vm38 = vcmask 130048
  %v40 = vsel %vm38, %v31, 0
  %42 = vmatprep.subr.bf16.mxu0 0
  %43 = vmatpush1.bf16.msra.mxu0 %v36
  %44 = vmatprep.subr.bf16.mxu0 0
  %45 = vmatpush1.bf16.msra.mxu0 0
  %46 = vmatprep.subr.bf16.mxu0 0
  %47 = vmatpush1.bf16.msra.mxu0 0
  %48 = vmatprep.subr.bf16.mxu0 0
  %49 = vmatpush1.bf16.msra.mxu0 0
  %50 = vmatprep.subr.bf16.mxu0 0
  %51 = vmatpush1.bf16.msra.mxu0 0
  %52 = vmatprep.subr.bf16.mxu0 0
  %53 = vmatpush1.bf16.msra.mxu0 0
  %54 = vmatprep.subr.bf16.mxu0 0
  %55 = vmatpush1.bf16.msra.mxu0 0
  %56 = vmatprep.subr.bf16.mxu0 0
  %57 = vmatpush1.bf16.msra.mxu0 0
  %58 = vmatprep.subr.bf16.mxu0 0
  %59 = vmatpush1.bf16.msra.mxu0 0
  %60 = vmatprep.subr.bf16.mxu0 0
  %61 = vmatpush1.bf16.msra.mxu0 0
  %62 = vmatprep.subr.bf16.mxu0 0
  %63 = vmatpush1.bf16.msra.mxu0 0
  %64 = vmatprep.subr.bf16.mxu0 0
  %65 = vmatpush1.bf16.msra.mxu0 0
  %66 = vmatprep.subr.bf16.mxu0 0
  %67 = vmatpush1.bf16.msra.mxu0 0
  %68 = vmatprep.subr.bf16.mxu0 0
  %69 = vmatpush1.bf16.msra.mxu0 0
  %70 = vmatprep.subr.bf16.mxu0 0
  %71 = vmatpush1.bf16.msra.mxu0 0
  %72 = vmatprep.subr.bf16.mxu0 0
  %73 = vmatpush1.bf16.msra.mxu0 0
  %74 = vmatprep.mubr.bf16.mxu0 0
  %75 = vmatmul.mubr.bf16.gmra.mrb[0].mxu0 %v40
  %v76 = vpop.f32.mrb[0].mxu0
  %v77 = vadd.f32 0.0, %v76
  %v78 = vpop.f32.mrb[0].mxu0
  %v79 = vpop.f32.mrb[0].mxu0
  %v80 = vadd.f32 0.0, %v79
  %v81 = vpop.f32.mrb[0].mxu0
  %82 = vdwg.mxu0
  %v83 = vadd.f32 %v21, %v77
  %v84 = vadd.f32 %v22, %v80
  %85 = vst [vmem:[#allocation2] sm:$0xff] %v83
  %86 = vst [vmem:[#allocation2 + $0x8] sm:$0xff] %v84
  // Predicated region
  $region18: #{fwd.6} parent=0 // pred_check
    %p87 = pneg %p15
  $region19: #{fwd.6} parent=0 // pred_check_branch
    %89 = sbr.rel (%p87) target = $region21
  $region20: #{fwd.6} parent=0 // pred_region
    %v90 = vld [vmem:[#allocation2] sm:$0xff]
    %v91 = vld [vmem:[#allocation2 + $0x8] sm:$0xff]
    %v92 = vld [vmem:[%s2] sm:$0x1]
    %v94 = vlaneseq
    %v95 = vshrl.u32 %v94, 7
    %v96 = vsub.s32 0, %v95
    %v97 = vrot.slane %v92, %v96
    %v99 = vadd.f32 %v90, %v97
    %v100 = vadd.f32 %v91, %v97
    %v101 = vpack.c.bf16 %v100, %v99
    %v103 = vunpack.c.l.b16 %v101
    %v104 = vunpack.c.h.b16 %v101
    %v105 = vpack.c.b16 %v103, %v103
    %v106 = vpack.c.b16 %v104, %v104
    %109 = vst [vmem:[%s3] sm:$0xf] %v105
    %110 = vst [vmem:[%s3 + $0x4] sm:$0xf] %v106
  $region21: #{fwd.6} parent=0 // pred_fallthru
    _
  // Predicated region
  $region22: #{fwd.6} parent=0 // pred_check
    _
  $region23: #{fwd.6} parent=0 // pred_check_branch
    %112 = sbr.rel (0) target = $region25
  $region24: #{fwd.6} parent=0 // pred_region
    _
  $region25: #{fwd.6} parent=0 // pred_fallthru
    _
  // Predicated region
  $region26: #{fwd.6} parent=0 // pred_check
    _
  $region27: #{fwd.6} parent=0 // pred_check_branch
    %114 = sbr.rel (0) target = $region29
  $region28: #{fwd.6} parent=0 // pred_region
    _
  $region29: #{fwd.6} parent=0 // pred_fallthru
    _

// kernel: fwd.8
$region0: #{fwd.8}
  #allocation0 [shape = 'u32[]', space=smem, size = 0x4, offset = 0x4, fixed_abs, tag = 'smem constant byte address 0x4 - core index']
  #allocation1 [shape = 'u32[144,128]{1,0:T(1,128)}', space=vmem, size = 0x12000, scoped, tag = 'internal scratch']
  %s0 = inlined_call_operand.vmem [shape: bf16[128,128], index: 0, kind: input, shape index: {}]
  %s1 = inlined_call_operand.vmem [shape: f32[1,128], index: 1, kind: input, shape index: {}]
  %s2 = inlined_call_operand.vmem [shape: f32[1,128], index: 2, kind: input, shape index: {}]
  %s3 = inlined_call_operand.vmem [shape: f32[1,128], index: 3, kind: input, shape index: {}]
  %s4 = inlined_call_operand.vmem [shape: f32[1,128], index: 4, kind: input, shape index: {}]
  %s5 = inlined_call_operand.vmem [shape: bf16[128,128], index: 5, kind: output, shape index: {}]
  %s6 = sld [smem:[#allocation0]]
  $region30: #{fwd.8} parent=0
    _
  %s8 = ssub.s32 1, %s6
  %s9 = scalar_select 0, %s8, %s6
  // Predicated region
  $region2: #{fwd.8} parent=0 // pred_check
    _
  $region3: #{fwd.8} parent=0 // pred_check_branch
    %11 = sbr.rel (0) target = $region5
  $region4: #{fwd.8} parent=0 // pred_region
    _
  $region5: #{fwd.8} parent=0 // pred_fallthru
    _
  // Predicated region
  $region6: #{fwd.8} parent=0 // pred_check
    _
  $region7: #{fwd.8} parent=0 // pred_check_branch
    %13 = sbr.rel (0) target = $region9
  $region8: #{fwd.8} parent=0 // pred_region
    _
  $region9: #{fwd.8} parent=0 // pred_fallthru
    _
  // Predicated region
  $region10: #{fwd.8} parent=0 // pred_check
    _
  $region11: #{fwd.8} parent=0 // pred_check_branch
    %15 = sbr.rel (0) target = $region13
  $region12: #{fwd.8} parent=0 // pred_region
    _
  $region13: #{fwd.8} parent=0 // pred_fallthru
    _
  // Predicated region
  $region14: #{fwd.8} parent=0 // pred_check
    _
  $region15: #{fwd.8} parent=0 // pred_check_branch
    %17 = sbr.rel (0) target = $region17
  $region16: #{fwd.8} parent=0 // pred_region
    _
  $region17: #{fwd.8} parent=0 // pred_fallthru
    _
  // Predicated region
  $region18: #{fwd.8} parent=0 // pred_check
    _
  $region19: #{fwd.8} parent=0 // pred_check_branch
    %19 = sbr.rel (0) target = $region21
  $region20: #{fwd.8} parent=0 // pred_region
    _
  $region21: #{fwd.8} parent=0 // pred_fallthru
    _
  %v20 = vld [vmem:[%s1] sm:$0x1]
  %v21 = vmul.f32 %v20, 0.0078125
  %v22 = vld [vmem:[%s2] sm:$0x1]
  %v23 = vmul.f32 %v22, 0.0078125
  %v24 = vmul.f32 %v21, %v21
  %v25 = vsub.f32 %v23, %v24
  %v26 = vmax.f32 %v25, 0.0
  %v27 = vld [vmem:[%s3] sm:$0x1]
  %v28 = vadd.f32 %v26, 1e-05
  %v29 = vrsqrt.pop %v28
  %v30 = vmul.f32 %v27, %v29
  %v31 = vld [vmem:[%s4] sm:$0x1]
  %v32 = vmul.f32 %v21, %v30
  %v33 = vsub.f32 %v31, %v32
  %v34 = vld [vmem:[%s0] sm:$0xf]
  %v35 = vld [vmem:[%s0 + $0x4] sm:$0xf]
  %v36 = vld [vmem:[%s0 + $0x8] sm:$0xf]
  %v37 = vld [vmem:[%s0 + $0xc] sm:$0xf]
  %v38 = vld [vmem:[%s0 + $0x10] sm:$0xf]
  %v39 = vld [vmem:[%s0 + $0x14] sm:$0xf]
  %v40 = vld [vmem:[%s0 + $0x18] sm:$0xf]
  %v41 = vld [vmem:[%s0 + $0x1c] sm:$0xf]
  %v42 = vld [vmem:[%s0 + $0x20] sm:$0xf]
  %v43 = vld [vmem:[%s0 + $0x24] sm:$0xf]
  %v44 = vld [vmem:[%s0 + $0x28] sm:$0xf]
  %v45 = vld [vmem:[%s0 + $0x2c] sm:$0xf]
  %v46 = vld [vmem:[%s0 + $0x30] sm:$0xf]
  %v47 = vld [vmem:[%s0 + $0x34] sm:$0xf]
  %v48 = vld [vmem:[%s0 + $0x38] sm:$0xf]
  %v49 = vld [vmem:[%s0 + $0x3c] sm:$0xf]
  %v50 = vunpack.c.l.bf16 %v34
  %v51 = vunpack.c.l.bf16 %v35
  %v52 = vunpack.c.l.bf16 %v36
  %v53 = vunpack.c.l.bf16 %v37
  %v54 = vunpack.c.l.bf16 %v38
  %v55 = vunpack.c.l.bf16 %v39
  %v56 = vunpack.c.l.bf16 %v40
  %v57 = vunpack.c.l.bf16 %v41
  %v58 = vunpack.c.l.bf16 %v42
  %v59 = vunpack.c.l.bf16 %v43
  %v60 = vunpack.c.l.bf16 %v44
  %v61 = vunpack.c.l.bf16 %v45
  %v62 = vunpack.c.l.bf16 %v46
  %v63 = vunpack.c.l.bf16 %v47
  %v64 = vunpack.c.l.bf16 %v48
  %v65 = vunpack.c.l.bf16 %v49
  %v67 = vlaneseq
  %v68 = vshrl.u32 %v67, 7
  %v69 = vsub.s32 0, %v68
  %v70 = vrot.slane %v30, %v69
  %v72 = vmul.f32 %v50, %v70
  %v73 = vmul.f32 %v51, %v70
  %v74 = vmul.f32 %v52, %v70
  %v75 = vmul.f32 %v53, %v70
  %v76 = vmul.f32 %v54, %v70
  %v77 = vmul.f32 %v55, %v70
  %v78 = vmul.f32 %v56, %v70
  %v79 = vmul.f32 %v57, %v70
  %v80 = vmul.f32 %v58, %v70
  %v81 = vmul.f32 %v59, %v70
  %v82 = vmul.f32 %v60, %v70
  %v83 = vmul.f32 %v61, %v70
  %v84 = vmul.f32 %v62, %v70
  %v85 = vmul.f32 %v63, %v70
  %v86 = vmul.f32 %v64, %v70
  %v87 = vmul.f32 %v65, %v70
  %v89 = vlaneseq
  %v90 = vshrl.u32 %v89, 7
  %v91 = vsub.s32 0, %v90
  %v92 = vrot.slane %v33, %v91
  %v94 = vadd.f32 %v72, %v92
  %v95 = vadd.f32 %v73, %v92
  %v96 = vadd.f32 %v74, %v92
  %v97 = vadd.f32 %v75, %v92
  %v98 = vadd.f32 %v76, %v92
  %v99 = vadd.f32 %v77, %v92
  %v100 = vadd.f32 %v78, %v92
  %v101 = vadd.f32 %v79, %v92
  %v102 = vadd.f32 %v80, %v92
  %v103 = vadd.f32 %v81, %v92
  %v104 = vadd.f32 %v82, %v92
  %v105 = vadd.f32 %v83, %v92
  %v106 = vadd.f32 %v84, %v92
  %v107 = vadd.f32 %v85, %v92
  %v108 = vadd.f32 %v86, %v92
  %v109 = vadd.f32 %v87, %v92
  %v110 = vmax.f32 %v94, 0.0
  %v111 = vmax.f32 %v95, 0.0
  %v112 = vmax.f32 %v96, 0.0
  %v113 = vmax.f32 %v97, 0.0
  %v114 = vmax.f32 %v98, 0.0
  %v115 = vmax.f32 %v99, 0.0
  %v116 = vmax.f32 %v100, 0.0
  %v117 = vmax.f32 %v101, 0.0
  %v118 = vmax.f32 %v102, 0.0
  %v119 = vmax.f32 %v103, 0.0
  %v120 = vmax.f32 %v104, 0.0
  %v121 = vmax.f32 %v105, 0.0
  %v122 = vmax.f32 %v106, 0.0
  %v123 = vmax.f32 %v107, 0.0
  %v124 = vmax.f32 %v108, 0.0
  %v125 = vmax.f32 %v109, 0.0
  %v126 = vpack.c.bf16 %v111, %v110
  %v127 = vpack.c.bf16 %v113, %v112
  %v128 = vpack.c.bf16 %v115, %v114
  %v129 = vpack.c.bf16 %v117, %v116
  %v130 = vpack.c.bf16 %v119, %v118
  %v131 = vpack.c.bf16 %v121, %v120
  %v132 = vpack.c.bf16 %v123, %v122
  %v133 = vpack.c.bf16 %v125, %v124
  %v142 = vunpack.c.l.b16 %v126
  %v143 = vunpack.c.h.b16 %v126
  %v144 = vunpack.c.l.b16 %v127
  %v145 = vunpack.c.h.b16 %v127
  %v146 = vunpack.c.l.b16 %v128
  %v147 = vunpack.c.h.b16 %v128
  %v148 = vunpack.c.l.b16 %v129
  %v149 = vunpack.c.h.b16 %v129
  %v150 = vunpack.c.l.b16 %v130
  %v151 = vunpack.c.h.b16 %v130
  %v152 = vunpack.c.l.b16 %v131
  %v153 = vunpack.c.h.b16 %v131
  %v154 = vunpack.c.l.b16 %v132
  %v155 = vunpack.c.h.b16 %v132
  %v156 = vunpack.c.l.b16 %v133
  %v157 = vunpack.c.h.b16 %v133
  %v158 = vpack.c.b16 %v142, %v142
  %v159 = vpack.c.b16 %v143, %v143
  %v160 = vpack.c.b16 %v144, %v144
  %v161 = vpack.c.b16 %v145, %v145
  %v162 = vpack.c.b16 %v146, %v146
  %v163 = vpack.c.b16 %v147, %v147
  %v164 = vpack.c.b16 %v148, %v148
  %v165 = vpack.c.b16 %v149, %v149
  %v166 = vpack.c.b16 %v150, %v150
  %v167 = vpack.c.b16 %v151, %v151
  %v168 = vpack.c.b16 %v152, %v152
  %v169 = vpack.c.b16 %v153, %v153
  %v170 = vpack.c.b16 %v154, %v154
  %v171 = vpack.c.b16 %v155, %v155
  %v172 = vpack.c.b16 %v156, %v156
  %v173 = vpack.c.b16 %v157, %v157
  %190 = vst [vmem:[%s5] sm:$0xf] %v158
  %191 = vst [vmem:[%s5 + $0x4] sm:$0xf] %v159
  %192 = vst [vmem:[%s5 + $0x8] sm:$0xf] %v160
  %193 = vst [vmem:[%s5 + $0xc] sm:$0xf] %v161
  %194 = vst [vmem:[%s5 + $0x10] sm:$0xf] %v162
  %195 = vst [vmem:[%s5 + $0x14] sm:$0xf] %v163
  %196 = vst [vmem:[%s5 + $0x18] sm:$0xf] %v164
  %197 = vst [vmem:[%s5 + $0x1c] sm:$0xf] %v165
  %198 = vst [vmem:[%s5 + $0x20] sm:$0xf] %v166
  %199 = vst [vmem:[%s5 + $0x24] sm:$0xf] %v167
  %200 = vst [vmem:[%s5 + $0x28] sm:$0xf] %v168
  %201 = vst [vmem:[%s5 + $0x2c] sm:$0xf] %v169
  %202 = vst [vmem:[%s5 + $0x30] sm:$0xf] %v170
  %203 = vst [vmem:[%s5 + $0x34] sm:$0xf] %v171
  %204 = vst [vmem:[%s5 + $0x38] sm:$0xf] %v172
  %205 = vst [vmem:[%s5 + $0x3c] sm:$0xf] %v173
  // Predicated region
  $region22: #{fwd.8} parent=0 // pred_check
    _
  $region23: #{fwd.8} parent=0 // pred_check_branch
    %207 = sbr.rel (0) target = $region25
  $region24: #{fwd.8} parent=0 // pred_region
    _
  $region25: #{fwd.8} parent=0 // pred_fallthru
    _
  // Predicated region
  $region26: #{fwd.8} parent=0 // pred_check
    _
  $region27: #{fwd.8} parent=0 // pred_check_branch
    %209 = sbr.rel (0) target = $region29
  $region28: #{fwd.8} parent=0 // pred_region
    _
  $region29: #{fwd.8} parent=0 // pred_fallthru
    _

// kernel: fwd.7
$region0: #{fwd.7}
  #allocation0 [shape = 'u32[]', space=smem, size = 0x4, offset = 0x4, fixed_abs, tag = 'smem constant byte address 0x4 - core index']
  #allocation1 [shape = 'u32[144,128]{1,0:T(1,128)}', space=vmem, size = 0x12000, scoped, tag = 'internal scratch']
  #allocation2 [shape = 'f32[128,128]{1,0:T(8,128)}', space=vmem, size = 0x10000, scoped, tag = 'scratch operand']
  %s0 = inlined_call_operand.vmem [shape: bf16[128,16], index: 0, kind: input, shape index: {}]
  %s1 = inlined_call_operand.vmem [shape: bf16[16,128], index: 1, kind: input, shape index: {}]
  %s2 = inlined_call_operand.vmem [shape: bf16[128,128], index: 2, kind: output, shape index: {0}]
  %s3 = inlined_call_operand.vmem [shape: f32[1,128], index: 3, kind: output, shape index: {1}]
  %s4 = inlined_call_operand.vmem [shape: f32[1,128], index: 4, kind: output, shape index: {2}]
  %5 = xla_tuple %s2, %s3, %s4
  %s6 = sld [smem:[#allocation0]]
  $region46: #{fwd.7} parent=0
    _
  %s8 = ssub.s32 1, %s6
  %s9 = scalar_select 0, %s8, %s6
  // Predicated region
  $region2: #{fwd.7} parent=0 // pred_check
    _
  $region3: #{fwd.7} parent=0 // pred_check_branch
    %11 = sbr.rel (0) target = $region5
  $region4: #{fwd.7} parent=0 // pred_region
    _
  $region5: #{fwd.7} parent=0 // pred_fallthru
    _
  // Predicated region
  $region6: #{fwd.7} parent=0 // pred_check
    _
  $region7: #{fwd.7} parent=0 // pred_check_branch
    %13 = sbr.rel (0) target = $region9
  $region8: #{fwd.7} parent=0 // pred_region
    _
  $region9: #{fwd.7} parent=0 // pred_fallthru
    _
  %p15 = scmp.eq.s32.totalorder 0, 0
  %p16 = scmp.eq.s32.totalorder 0, 0
  %p17 = pnand %p15, %p16
  %p18 = pneg %p17
  // Predicated region
  $region10: #{fwd.7} parent=0 // pred_check
    _
  $region11: #{fwd.7} parent=0 // pred_check_branch
    %20 = sbr.rel (%p17) target = $region13
  $region12: #{fwd.7} parent=0 // pred_region
    %21 = vst [vmem:[%s3] sm:$0x1] 0.0
    %22 = vst [vmem:[%s4] sm:$0x1] 0.0
  $region13: #{fwd.7} parent=0 // pred_fallthru
    _
  // Predicated region
  $region14: #{fwd.7} parent=0 // pred_check
    %p23 = pneg %p16
  $region15: #{fwd.7} parent=0 // pred_check_branch
    %25 = sbr.rel (%p23) target = $region17
  $region16: #{fwd.7} parent=0 // pred_region
    %26 = vst [vmem:[#allocation2] sm:$0xff] 0.0
    %27 = vst [vmem:[#allocation2 + $0x8] sm:$0xff] 0.0
    %28 = vst [vmem:[#allocation2 + $0x10] sm:$0xff] 0.0
    %29 = vst [vmem:[#allocation2 + $0x18] sm:$0xff] 0.0
    %30 = vst [vmem:[#allocation2 + $0x20] sm:$0xff] 0.0
    %31 = vst [vmem:[#allocation2 + $0x28] sm:$0xff] 0.0
    %32 = vst [vmem:[#allocation2 + $0x30] sm:$0xff] 0.0
    %33 = vst [vmem:[#allocation2 + $0x38] sm:$0xff] 0.0
    %34 = vst [vmem:[#allocation2 + $0x40] sm:$0xff] 0.0
    %35 = vst [vmem:[#allocation2 + $0x48] sm:$0xff] 0.0
    %36 = vst [vmem:[#allocation2 + $0x50] sm:$0xff] 0.0
    %37 = vst [vmem:[#allocation2 + $0x58] sm:$0xff] 0.0
    %38 = vst [vmem:[#allocation2 + $0x60] sm:$0xff] 0.0
    %39 = vst [vmem:[#allocation2 + $0x68] sm:$0xff] 0.0
    %40 = vst [vmem:[#allocation2 + $0x70] sm:$0xff] 0.0
    %41 = vst [vmem:[#allocation2 + $0x78] sm:$0xff] 0.0
  $region17: #{fwd.7} parent=0 // pred_fallthru
    _
  %v42 = vld [vmem:[#allocation2] sm:$0xff]
  %v43 = vld [vmem:[#allocation2 + $0x8] sm:$0xff]
  %v44 = vld [vmem:[#allocation2 + $0x10] sm:$0xff]
  %v45 = vld [vmem:[#allocation2 + $0x18] sm:$0xff]
  %v46 = vld [vmem:[#allocation2 + $0x20] sm:$0xff]
  %v47 = vld [vmem:[#allocation2 + $0x28] sm:$0xff]
  %v48 = vld [vmem:[#allocation2 + $0x30] sm:$0xff]
  %v49 = vld [vmem:[#allocation2 + $0x38] sm:$0xff]
  %v50 = vld [vmem:[#allocation2 + $0x40] sm:$0xff]
  %v51 = vld [vmem:[#allocation2 + $0x48] sm:$0xff]
  %v52 = vld [vmem:[#allocation2 + $0x50] sm:$0xff]
  %v53 = vld [vmem:[#allocation2 + $0x58] sm:$0xff]
  %v54 = vld [vmem:[#allocation2 + $0x60] sm:$0xff]
  %v55 = vld [vmem:[#allocation2 + $0x68] sm:$0xff]
  %v56 = vld [vmem:[#allocation2 + $0x70] sm:$0xff]
  %v57 = vld [vmem:[#allocation2 + $0x78] sm:$0xff]
  %v58 = vld [vmem:[%s0] sm:$0xf]
  %v59 = vld [vmem:[%s0 + $0x4] sm:$0xf]
  %v60 = vld [vmem:[%s0 + $0x8] sm:$0xf]
  %v61 = vld [vmem:[%s0 + $0xc] sm:$0xf]
  %v62 = vld [vmem:[%s0 + $0x10] sm:$0xf]
  %v63 = vld [vmem:[%s0 + $0x14] sm:$0xf]
  %v64 = vld [vmem:[%s0 + $0x18] sm:$0xf]
  %v65 = vld [vmem:[%s0 + $0x1c] sm:$0xf]
  %v66 = vld [vmem:[%s0 + $0x20] sm:$0xf]
  %v67 = vld [vmem:[%s0 + $0x24] sm:$0xf]
  %v68 = vld [vmem:[%s0 + $0x28] sm:$0xf]
  %v69 = vld [vmem:[%s0 + $0x2c] sm:$0xf]
  %v70 = vld [vmem:[%s0 + $0x30] sm:$0xf]
  %v71 = vld [vmem:[%s0 + $0x34] sm:$0xf]
  %v72 = vld [vmem:[%s0 + $0x38] sm:$0xf]
  %v73 = vld [vmem:[%s0 + $0x3c] sm:$0xf]
  %v74 = vld [vmem:[%s1] sm:$0xf]
  %v75 = vld [vmem:[%s1 + $0x4] sm:$0xf]
  %v92 = vunpack.c.l.b16 %v58
  %v93 = vunpack.c.l.b16 %v59
  %v94 = vunpack.c.l.b16 %v60
  %v95 = vunpack.c.l.b16 %v61
  %v96 = vunpack.c.l.b16 %v62
  %v97 = vunpack.c.l.b16 %v63
  %v98 = vunpack.c.l.b16 %v64
  %v99 = vunpack.c.l.b16 %v65
  %v100 = vunpack.c.l.b16 %v66
  %v101 = vunpack.c.l.b16 %v67
  %v102 = vunpack.c.l.b16 %v68
  %v103 = vunpack.c.l.b16 %v69
  %v104 = vunpack.c.l.b16 %v70
  %v105 = vunpack.c.l.b16 %v71
  %v106 = vunpack.c.l.b16 %v72
  %v107 = vunpack.c.l.b16 %v73
  %v108 = vpack.c.b16 %v93, %v92
  %v109 = vpack.c.b16 %v95, %v94
  %v110 = vpack.c.b16 %v97, %v96
  %v111 = vpack.c.b16 %v99, %v98
  %v112 = vpack.c.b16 %v101, %v100
  %v113 = vpack.c.b16 %v103, %v102
  %v114 = vpack.c.b16 %v105, %v104
  %v115 = vpack.c.b16 %v107, %v106
  %v118 = vunpack.c.l.b16 %v74
  %v119 = vunpack.c.l.b16 %v75
  %v120 = vpack.c.b16 %v119, %v118
  %vm122 = vcmask 130048
  %v124 = vsel %vm122, %v108, 0
  %v127 = vsel %vm122, %v109, 0
  %v130 = vsel %vm122, %v110, 0
  %v133 = vsel %vm122, %v111, 0
  %v136 = vsel %vm122, %v112, 0
  %v139 = vsel %vm122, %v113, 0
  %v142 = vsel %vm122, %v114, 0
  %v145 = vsel %vm122, %v115, 0
  %147 = vmatprep.subr.bf16.mxu0 0
  %148 = vmatpush1.bf16.msra.mxu0 %v120
  %149 = vmatprep.subr.bf16.mxu0 0
  %150 = vmatpush1.bf16.msra.mxu0 0
  %151 = vmatprep.subr.bf16.mxu0 0
  %152 = vmatpush1.bf16.msra.mxu0 0
  %153 = vmatprep.subr.bf16.mxu0 0
  %154 = vmatpush1.bf16.msra.mxu0 0
  %155 = vmatprep.subr.bf16.mxu0 0
  %156 = vmatpush1.bf16.msra.mxu0 0
  %157 = vmatprep.subr.bf16.mxu0 0
  %158 = vmatpush1.bf16.msra.mxu0 0
  %159 = vmatprep.subr.bf16.mxu0 0
  %160 = vmatpush1.bf16.msra.mxu0 0
  %161 = vmatprep.subr.bf16.mxu0 0
  %162 = vmatpush1.bf16.msra.mxu0 0
  %163 = vmatprep.subr.bf16.mxu0 0
  %164 = vmatpush1.bf16.msra.mxu0 0
  %165 = vmatprep.subr.bf16.mxu0 0
  %166 = vmatpush1.bf16.msra.mxu0 0
  %167 = vmatprep.subr.bf16.mxu0 0
  %168 = vmatpush1.bf16.msra.mxu0 0
  %169 = vmatprep.subr.bf16.mxu0 0
  %170 = vmatpush1.bf16.msra.mxu0 0
  %171 = vmatprep.subr.bf16.mxu0 0
  %172 = vmatpush1.bf16.msra.mxu0 0
  %173 = vmatprep.subr.bf16.mxu0 0
  %174 = vmatpush1.bf16.msra.mxu0 0
  %175 = vmatprep.subr.bf16.mxu0 0
  %176 = vmatpush1.bf16.msra.mxu0 0
  %177 = vmatprep.subr.bf16.mxu0 0
  %178 = vmatpush1.bf16.msra.mxu0 0
  %179 = vmatprep.mubr.bf16.mxu0 0
  %180 = vmatmul.mubr.bf16.gmra.mrb[0].mxu0 %v124
  %v181 = vpop.f32.mrb[0].mxu0
  %v182 = vadd.f32 0.0, %v181
  %v183 = vpop.f32.mrb[0].mxu0
  %v184 = vpop.f32.mrb[0].mxu0
  %v185 = vadd.f32 0.0, %v184
  %v186 = vpop.f32.mrb[0].mxu0
  %187 = vmatprep.mubr.bf16.mxu0 0
  %188 = vmatmul.mubr.bf16.gmra.mrb[0].mxu0 %v127
  %v189 = vpop.f32.mrb[0].mxu0
  %v190 = vadd.f32 0.0, %v189
  %v191 = vpop.f32.mrb[0].mxu0
  %v192 = vpop.f32.mrb[0].mxu0
  %v193 = vadd.f32 0.0, %v192
  %v194 = vpop.f32.mrb[0].mxu0
  %195 = vmatprep.mubr.bf16.mxu0 0
  %196 = vmatmul.mubr.bf16.gmra.mrb[0].mxu0 %v130
  %v197 = vpop.f32.mrb[0].mxu0
  %v198 = vadd.f32 0.0, %v197
  %v199 = vpop.f32.mrb[0].mxu0
  %v200 = vpop.f32.mrb[0].mxu0
  %v201 = vadd.f32 0.0, %v200
  %v202 = vpop.f32.mrb[0].mxu0
  %203 = vmatprep.mubr.bf16.mxu0 0
  %204 = vmatmul.mubr.bf16.gmra.mrb[0].mxu0 %v133
  %v205 = vpop.f32.mrb[0].mxu0
  %v206 = vadd.f32 0.0, %v205
  %v207 = vpop.f32.mrb[0].mxu0
  %v208 = vpop.f32.mrb[0].mxu0
  %v209 = vadd.f32 0.0, %v208
  %v210 = vpop.f32.mrb[0].mxu0
  %211 = vmatprep.mubr.bf16.mxu0 0
  %212 = vmatmul.mubr.bf16.gmra.mrb[0].mxu0 %v136
  %v213 = vpop.f32.mrb[0].mxu0
  %v214 = vadd.f32 0.0, %v213
  %v215 = vpop.f32.mrb[0].mxu0
  %v216 = vpop.f32.mrb[0].mxu0
  %v217 = vadd.f32 0.0, %v216
  %v218 = vpop.f32.mrb[0].mxu0
  %219 = vmatprep.mubr.bf16.mxu0 0
  %220 = vmatmul.mubr.bf16.gmra.mrb[0].mxu0 %v139
  %v221 = vpop.f32.mrb[0].mxu0
  %v222 = vadd.f32 0.0, %v221
  %v223 = vpop.f32.mrb[0].mxu0
  %v224 = vpop.f32.mrb[0].mxu0
  %v225 = vadd.f32 0.0, %v224
  %v226 = vpop.f32.mrb[0].mxu0
  %227 = vmatprep.mubr.bf16.mxu0 0
  %228 = vmatmul.mubr.bf16.gmra.mrb[0].mxu0 %v142
  %v229 = vpop.f32.mrb[0].mxu0
  %v230 = vadd.f32 0.0, %v229
  %v231 = vpop.f32.mrb[0].mxu0
  %v232 = vpop.f32.mrb[0].mxu0
  %v233 = vadd.f32 0.0, %v232
  %v234 = vpop.f32.mrb[0].mxu0
  %235 = vmatprep.mubr.bf16.mxu0 0
  %236 = vmatmul.mubr.bf16.gmra.mrb[0].mxu0 %v145
  %v237 = vpop.f32.mrb[0].mxu0
  %v238 = vadd.f32 0.0, %v237
  %v239 = vpop.f32.mrb[0].mxu0
  %v240 = vpop.f32.mrb[0].mxu0
  %v241 = vadd.f32 0.0, %v240
  %v242 = vpop.f32.mrb[0].mxu0
  %243 = vdwg.mxu0
  %v244 = vadd.f32 %v42, %v182
  %v245 = vadd.f32 %v43, %v185
  %v246 = vadd.f32 %v44, %v190
  %v247 = vadd.f32 %v45, %v193
  %v248 = vadd.f32 %v46, %v198
  %v249 = vadd.f32 %v47, %v201
  %v250 = vadd.f32 %v48, %v206
  %v251 = vadd.f32 %v49, %v209
  %v252 = vadd.f32 %v50, %v214
  %v253 = vadd.f32 %v51, %v217
  %v254 = vadd.f32 %v52, %v222
  %v255 = vadd.f32 %v53, %v225
  %v256 = vadd.f32 %v54, %v230
  %v257 = vadd.f32 %v55, %v233
  %v258 = vadd.f32 %v56, %v238
  %v259 = vadd.f32 %v57, %v241
  %260 = vst [vmem:[#allocation2] sm:$0xff] %v244
  %261 = vst [vmem:[#allocation2 + $0x8] sm:$0xff] %v245
  %262 = vst [vmem:[#allocation2 + $0x10] sm:$0xff] %v246
  %263 = vst [vmem:[#allocation2 + $0x18] sm:$0xff] %v247
  %264 = vst [vmem:[#allocation2 + $0x20] sm:$0xff] %v248
  %265 = vst [vmem:[#allocation2 + $0x28] sm:$0xff] %v249
  %266 = vst [vmem:[#allocation2 + $0x30] sm:$0xff] %v250
  %267 = vst [vmem:[#allocation2 + $0x38] sm:$0xff] %v251
  %268 = vst [vmem:[#allocation2 + $0x40] sm:$0xff] %v252
  %269 = vst [vmem:[#allocation2 + $0x48] sm:$0xff] %v253
  %270 = vst [vmem:[#allocation2 + $0x50] sm:$0xff] %v254
  %271 = vst [vmem:[#allocation2 + $0x58] sm:$0xff] %v255
  %272 = vst [vmem:[#allocation2 + $0x60] sm:$0xff] %v256
  %273 = vst [vmem:[#allocation2 + $0x68] sm:$0xff] %v257
  %274 = vst [vmem:[#allocation2 + $0x70] sm:$0xff] %v258
  %275 = vst [vmem:[#allocation2 + $0x78] sm:$0xff] %v259
  // Predicated region
  $region18: #{fwd.7} parent=0 // pred_check
    %p276 = pneg %p16
  $region19: #{fwd.7} parent=0 // pred_check_branch
    %278 = sbr.rel (%p276) target = $region21
  $region20: #{fwd.7} parent=0 // pred_region
    %v279 = vld [vmem:[#allocation2] sm:$0xff]
    %v280 = vld [vmem:[#allocation2 + $0x8] sm:$0xff]
    %v281 = vld [vmem:[#allocation2 + $0x10] sm:$0xff]
    %v282 = vld [vmem:[#allocation2 + $0x18] sm:$0xff]
    %v283 = vld [vmem:[#allocation2 + $0x20] sm:$0xff]
    %v284 = vld [vmem:[#allocation2 + $0x28] sm:$0xff]
    %v285 = vld [vmem:[#allocation2 + $0x30] sm:$0xff]
    %v286 = vld [vmem:[#allocation2 + $0x38] sm:$0xff]
    %v287 = vld [vmem:[#allocation2 + $0x40] sm:$0xff]
    %v288 = vld [vmem:[#allocation2 + $0x48] sm:$0xff]
    %v289 = vld [vmem:[#allocation2 + $0x50] sm:$0xff]
    %v290 = vld [vmem:[#allocation2 + $0x58] sm:$0xff]
    %v291 = vld [vmem:[#allocation2 + $0x60] sm:$0xff]
    %v292 = vld [vmem:[#allocation2 + $0x68] sm:$0xff]
    %v293 = vld [vmem:[#allocation2 + $0x70] sm:$0xff]
    %v294 = vld [vmem:[#allocation2 + $0x78] sm:$0xff]
    %v295 = vpack.c.bf16 %v280, %v279
    %v296 = vpack.c.bf16 %v282, %v281
    %v297 = vpack.c.bf16 %v284, %v283
    %v298 = vpack.c.bf16 %v286, %v285
    %v299 = vpack.c.bf16 %v288, %v287
    %v300 = vpack.c.bf16 %v290, %v289
    %v301 = vpack.c.bf16 %v292, %v291
    %v302 = vpack.c.bf16 %v294, %v293
    %v311 = vunpack.c.l.b16 %v295
    %v312 = vunpack.c.h.b16 %v295
    %v313 = vunpack.c.l.b16 %v296
    %v314 = vunpack.c.h.b16 %v296
    %v315 = vunpack.c.l.b16 %v297
    %v316 = vunpack.c.h.b16 %v297
    %v317 = vunpack.c.l.b16 %v298
    %v318 = vunpack.c.h.b16 %v298
    %v319 = vunpack.c.l.b16 %v299
    %v320 = vunpack.c.h.b16 %v299
    %v321 = vunpack.c.l.b16 %v300
    %v322 = vunpack.c.h.b16 %v300
    %v323 = vunpack.c.l.b16 %v301
    %v324 = vunpack.c.h.b16 %v301
    %v325 = vunpack.c.l.b16 %v302
    %v326 = vunpack.c.h.b16 %v302
    %v327 = vpack.c.b16 %v311, %v311
    %v328 = vpack.c.b16 %v312, %v312
    %v329 = vpack.c.b16 %v313, %v313
    %v330 = vpack.c.b16 %v314, %v314
    %v331 = vpack.c.b16 %v315, %v315
    %v332 = vpack.c.b16 %v316, %v316
    %v333 = vpack.c.b16 %v317, %v317
    %v334 = vpack.c.b16 %v318, %v318
    %v335 = vpack.c.b16 %v319, %v319
    %v336 = vpack.c.b16 %v320, %v320
    %v337 = vpack.c.b16 %v321, %v321
    %v338 = vpack.c.b16 %v322, %v322
    %v339 = vpack.c.b16 %v323, %v323
    %v340 = vpack.c.b16 %v324, %v324
    %v341 = vpack.c.b16 %v325, %v325
    %v342 = vpack.c.b16 %v326, %v326
    %359 = vst [vmem:[%s2] sm:$0xf] %v327
    %360 = vst [vmem:[%s2 + $0x4] sm:$0xf] %v328
    %361 = vst [vmem:[%s2 + $0x8] sm:$0xf] %v329
    %362 = vst [vmem:[%s2 + $0xc] sm:$0xf] %v330
    %363 = vst [vmem:[%s2 + $0x10] sm:$0xf] %v331
    %364 = vst [vmem:[%s2 + $0x14] sm:$0xf] %v332
    %365 = vst [vmem:[%s2 + $0x18] sm:$0xf] %v333
    %366 = vst [vmem:[%s2 + $0x1c] sm:$0xf] %v334
    %367 = vst [vmem:[%s2 + $0x20] sm:$0xf] %v335
    %368 = vst [vmem:[%s2 + $0x24] sm:$0xf] %v336
    %369 = vst [vmem:[%s2 + $0x28] sm:$0xf] %v337
    %370 = vst [vmem:[%s2 + $0x2c] sm:$0xf] %v338
    %371 = vst [vmem:[%s2 + $0x30] sm:$0xf] %v339
    %372 = vst [vmem:[%s2 + $0x34] sm:$0xf] %v340
    %373 = vst [vmem:[%s2 + $0x38] sm:$0xf] %v341
    %374 = vst [vmem:[%s2 + $0x3c] sm:$0xf] %v342
    %v375 = vld [vmem:[%s3] sm:$0x1]
    %v376 = vadd.f32 %v279, %v280
    %v377 = vadd.f32 %v376, %v281
    %v378 = vadd.f32 %v377, %v282
    %v379 = vadd.f32 %v378, %v283
    %v380 = vadd.f32 %v379, %v284
    %v381 = vadd.f32 %v380, %v285
    %v382 = vadd.f32 %v381, %v286
    %v383 = vadd.f32 %v382, %v287
    %v384 = vadd.f32 %v383, %v288
    %v385 = vadd.f32 %v384, %v289
    %v386 = vadd.f32 %v385, %v290
    %v387 = vadd.f32 %v386, %v291
    %v388 = vadd.f32 %v387, %v292
    %v389 = vadd.f32 %v388, %v293
    %v390 = vadd.f32 %v389, %v294
    %v391 = vrot.slane %v390, 4
    %v392 = vadd.f32 %v390, %v391
    %v393 = vrot.slane %v392, 2
    %v394 = vadd.f32 %v392, %v393
    %v395 = vrot.slane %v394, 1
    %v396 = vadd.f32 %v394, %v395
    %v397 = vadd.f32 %v375, %v396
    %398 = vst [vmem:[%s3] sm:$0x1] %v397
    %v399 = vld [vmem:[%s4] sm:$0x1]
    %v400 = vmul.f32 %v279, %v279
    %v401 = vmul.f32 %v280, %v280
    %v402 = vmul.f32 %v281, %v281
    %v403 = vmul.f32 %v282, %v282
    %v404 = vmul.f32 %v283, %v283
    %v405 = vmul.f32 %v284, %v284
    %v406 = vmul.f32 %v285, %v285
    %v407 = vmul.f32 %v286, %v286
    %v408 = vmul.f32 %v287, %v287
    %v409 = vmul.f32 %v288, %v288
    %v410 = vmul.f32 %v289, %v289
    %v411 = vmul.f32 %v290, %v290
    %v412 = vmul.f32 %v291, %v291
    %v413 = vmul.f32 %v292, %v292
    %v414 = vmul.f32 %v293, %v293
    %v415 = vmul.f32 %v294, %v294
    %v416 = vadd.f32 %v400, %v401
    %v417 = vadd.f32 %v416, %v402
    %v418 = vadd.f32 %v417, %v403
    %v419 = vadd.f32 %v418, %v404
    %v420 = vadd.f32 %v419, %v405
    %v421 = vadd.f32 %v420, %v406
    %v422 = vadd.f32 %v421, %v407
    %v423 = vadd.f32 %v422, %v408
    %v424 = vadd.f32 %v423, %v409
    %v425 = vadd.f32 %v424, %v410
    %v426 = vadd.f32 %v425, %v411
    %v427 = vadd.f32 %v426, %v412
    %v428 = vadd.f32 %v427, %v413
    %v429 = vadd.f32 %v428, %v414
    %v430 = vadd.f32 %v429, %v415
    %v431 = vrot.slane %v430, 4
    %v432 = vadd.f32 %v430, %v431
    %v433 = vrot.slane %v432, 2
    %v434 = vadd.f32 %v432, %v433
    %v435 = vrot.slane %v434, 1
    %v436 = vadd.f32 %v434, %v435
    %v437 = vadd.f32 %v399, %v436
    %438 = vst [vmem:[%s4] sm:$0x1] %v437
  $region21: #{fwd.7} parent=0 // pred_fallthru
    _
  // Predicated region
  $region22: #{fwd.7} parent=0 // pred_check
    _
  $region23: #{fwd.7} parent=0 // pred_check_branch
    %440 = sbr.rel (0) target = $region25
  $region24: #{fwd.7} parent=0 // pred_region
    _
  $region25: #{fwd.7} parent=0 // pred_fallthru
    _
  // Predicated region
  $region26: #{fwd.7} parent=0 // pred_check
    _
  $region27: #{fwd.7} parent=0 // pred_check_branch
    %442 = sbr.rel (0) target = $region29
  $region28: #{fwd.7} parent=0 // pred_region
    _
  $region29: #{fwd.7} parent=0 // pred_fallthru
    _
  // Predicated region
  $region30: #{fwd.7} parent=0 // pred_check
    _
  $region31: #{fwd.7} parent=0 // pred_check_branch
    %444 = sbr.rel (0) target = $region33
  $region32: #{fwd.7} parent=0 // pred_region
    _
  $region33: #{fwd.7} parent=0 // pred_fallthru
    _
  // Predicated region
  $region34: #{fwd.7} parent=0 // pred_check
    _
  $region35: #{fwd.7} parent=0 // pred_check_branch
    %446 = sbr.rel (0) target = $region37
  $region36: #{fwd.7} parent=0 // pred_region
    _
  $region37: #{fwd.7} parent=0 // pred_fallthru
    _
  // Predicated region
  $region38: #{fwd.7} parent=0 // pred_check
    _
  $region39: #{fwd.7} parent=0 // pred_check_branch
    %448 = sbr.rel (0) target = $region41
  $region40: #{fwd.7} parent=0 // pred_region
    _
  $region41: #{fwd.7} parent=0 // pred_fallthru
    _
  // Predicated region
  $region42: #{fwd.7} parent=0 // pred_check
    _
  $region43: #{fwd.7} parent=0 // pred_check_branch
    %450 = sbr.rel (0) target = $region45
  $region44: #{fwd.7} parent=0 // pred_region
    _
  $region45: #{fwd.7} parent=0 // pred_fallthru
    _

// kernel: fwd.10
$region0: #{fwd.10}
  #allocation0 [shape = 'u32[]', space=smem, size = 0x4, offset = 0x4, fixed_abs, tag = 'smem constant byte address 0x4 - core index']
  #allocation1 [shape = 'u32[144,128]{1,0:T(1,128)}', space=vmem, size = 0x12000, scoped, tag = 'internal scratch']
  %s0 = inlined_call_operand.vmem [shape: bf16[32,128], index: 0, kind: input, shape index: {}]
  %s1 = inlined_call_operand.vmem [shape: f32[1,128], index: 1, kind: input, shape index: {}]
  %s2 = inlined_call_operand.vmem [shape: f32[1,128], index: 2, kind: input, shape index: {}]
  %s3 = inlined_call_operand.vmem [shape: f32[1,128], index: 3, kind: input, shape index: {}]
  %s4 = inlined_call_operand.vmem [shape: f32[1,128], index: 4, kind: input, shape index: {}]
  %s5 = inlined_call_operand.vmem [shape: bf16[32,128], index: 5, kind: output, shape index: {}]
  %s6 = sld [smem:[#allocation0]]
  $region30: #{fwd.10} parent=0
    _
  %s8 = ssub.s32 1, %s6
  %s9 = scalar_select 0, %s8, %s6
  // Predicated region
  $region2: #{fwd.10} parent=0 // pred_check
    _
  $region3: #{fwd.10} parent=0 // pred_check_branch
    %11 = sbr.rel (0) target = $region5
  $region4: #{fwd.10} parent=0 // pred_region
    _
  $region5: #{fwd.10} parent=0 // pred_fallthru
    _
  // Predicated region
  $region6: #{fwd.10} parent=0 // pred_check
    _
  $region7: #{fwd.10} parent=0 // pred_check_branch
    %13 = sbr.rel (0) target = $region9
  $region8: #{fwd.10} parent=0 // pred_region
    _
  $region9: #{fwd.10} parent=0 // pred_fallthru
    _
  // Predicated region
  $region10: #{fwd.10} parent=0 // pred_check
    _
  $region11: #{fwd.10} parent=0 // pred_check_branch
    %15 = sbr.rel (0) target = $region13
  $region12: #{fwd.10} parent=0 // pred_region
    _
  $region13: #{fwd.10} parent=0 // pred_fallthru
    _
  // Predicated region
  $region14: #{fwd.10} parent=0 // pred_check
    _
  $region15: #{fwd.10} parent=0 // pred_check_branch
    %17 = sbr.rel (0) target = $region17
  $region16: #{fwd.10} parent=0 // pred_region
    _
  $region17: #{fwd.10} parent=0 // pred_fallthru
    _
  // Predicated region
  $region18: #{fwd.10} parent=0 // pred_check
    _
  $region19: #{fwd.10} parent=0 // pred_check_branch
    %19 = sbr.rel (0) target = $region21
  $region20: #{fwd.10} parent=0 // pred_region
    _
  $region21: #{fwd.10} parent=0 // pred_fallthru
    _
  %v20 = vld [vmem:[%s1] sm:$0x1]
  %v21 = vmul.f32 %v20, 0.03125
  %v22 = vld [vmem:[%s2] sm:$0x1]
  %v23 = vmul.f32 %v22, 0.03125
  %v24 = vmul.f32 %v21, %v21
  %v25 = vsub.f32 %v23, %v24
  %v26 = vmax.f32 %v25, 0.0
  %v27 = vld [vmem:[%s3] sm:$0x1]
  %v28 = vadd.f32 %v26, 1e-05
  %v29 = vrsqrt.pop %v28
  %v30 = vmul.f32 %v27, %v29
  %v31 = vld [vmem:[%s4] sm:$0x1]
  %v32 = vmul.f32 %v21, %v30
  %v33 = vsub.f32 %v31, %v32
  %v34 = vld [vmem:[%s0] sm:$0xf]
  %v35 = vld [vmem:[%s0 + $0x4] sm:$0xf]
  %v36 = vld [vmem:[%s0 + $0x8] sm:$0xf]
  %v37 = vld [vmem:[%s0 + $0xc] sm:$0xf]
  %v38 = vunpack.c.l.bf16 %v34
  %v39 = vunpack.c.l.bf16 %v35
  %v40 = vunpack.c.l.bf16 %v36
  %v41 = vunpack.c.l.bf16 %v37
  %v43 = vlaneseq
  %v44 = vshrl.u32 %v43, 7
  %v45 = vsub.s32 0, %v44
  %v46 = vrot.slane %v30, %v45
  %v48 = vmul.f32 %v38, %v46
  %v49 = vmul.f32 %v39, %v46
  %v50 = vmul.f32 %v40, %v46
  %v51 = vmul.f32 %v41, %v46
  %v53 = vlaneseq
  %v54 = vshrl.u32 %v53, 7
  %v55 = vsub.s32 0, %v54
  %v56 = vrot.slane %v33, %v55
  %v58 = vadd.f32 %v48, %v56
  %v59 = vadd.f32 %v49, %v56
  %v60 = vadd.f32 %v50, %v56
  %v61 = vadd.f32 %v51, %v56
  %v62 = vmax.f32 %v58, 0.0
  %v63 = vmax.f32 %v59, 0.0
  %v64 = vmax.f32 %v60, 0.0
  %v65 = vmax.f32 %v61, 0.0
  %v66 = vpack.c.bf16 %v63, %v62
  %v67 = vpack.c.bf16 %v65, %v64
  %v70 = vunpack.c.l.b16 %v66
  %v71 = vunpack.c.h.b16 %v66
  %v72 = vunpack.c.l.b16 %v67
  %v73 = vunpack.c.h.b16 %v67
  %v74 = vpack.c.b16 %v70, %v70
  %v75 = vpack.c.b16 %v71, %v71
  %v76 = vpack.c.b16 %v72, %v72
  %v77 = vpack.c.b16 %v73, %v73
  %82 = vst [vmem:[%s5] sm:$0xf] %v74
  %83 = vst [vmem:[%s5 + $0x4] sm:$0xf] %v75
  %84 = vst [vmem:[%s5 + $0x8] sm:$0xf] %v76
  %85 = vst [vmem:[%s5 + $0xc] sm:$0xf] %v77
  // Predicated region
  $region22: #{fwd.10} parent=0 // pred_check
    _
  $region23: #{fwd.10} parent=0 // pred_check_branch
    %87 = sbr.rel (0) target = $region25
  $region24: #{fwd.10} parent=0 // pred_region
    _
  $region25: #{fwd.10} parent=0 // pred_fallthru
    _
  // Predicated region
  $region26: #{fwd.10} parent=0 // pred_check
    _
  $region27: #{fwd.10} parent=0 // pred_check_branch
    %89 = sbr.rel (0) target = $region29
  $region28: #{fwd.10} parent=0 // pred_region
    _
  $region29: #{fwd.10} parent=0 // pred_fallthru
    _

// kernel: fwd.9
$region0: #{fwd.9}
  #allocation0 [shape = 'u32[]', space=smem, size = 0x4, offset = 0x4, fixed_abs, tag = 'smem constant byte address 0x4 - core index']
  #allocation1 [shape = 'u32[144,128]{1,0:T(1,128)}', space=vmem, size = 0x12000, scoped, tag = 'internal scratch']
  #allocation2 [shape = 'f32[32,128]{1,0:T(8,128)}', space=vmem, size = 0x4000, scoped, tag = 'scratch operand']
  %s0 = inlined_call_operand.vmem [shape: bf16[32,128], index: 0, kind: input, shape index: {}]
  %s1 = inlined_call_operand.vmem [shape: bf16[128,128], index: 1, kind: input, shape index: {}]
  %s2 = inlined_call_operand.vmem [shape: bf16[32,128], index: 2, kind: output, shape index: {0}]
  %s3 = inlined_call_operand.vmem [shape: f32[1,128], index: 3, kind: output, shape index: {1}]
  %s4 = inlined_call_operand.vmem [shape: f32[1,128], index: 4, kind: output, shape index: {2}]
  %5 = xla_tuple %s2, %s3, %s4
  %s6 = sld [smem:[#allocation0]]
  $region46: #{fwd.9} parent=0
    _
  %s8 = ssub.s32 1, %s6
  %s9 = scalar_select 0, %s8, %s6
  // Predicated region
  $region2: #{fwd.9} parent=0 // pred_check
    _
  $region3: #{fwd.9} parent=0 // pred_check_branch
    %11 = sbr.rel (0) target = $region5
  $region4: #{fwd.9} parent=0 // pred_region
    _
  $region5: #{fwd.9} parent=0 // pred_fallthru
    _
  // Predicated region
  $region6: #{fwd.9} parent=0 // pred_check
    _
  $region7: #{fwd.9} parent=0 // pred_check_branch
    %13 = sbr.rel (0) target = $region9
  $region8: #{fwd.9} parent=0 // pred_region
    _
  $region9: #{fwd.9} parent=0 // pred_fallthru
    _
  %p15 = scmp.eq.s32.totalorder 0, 0
  %p16 = scmp.eq.s32.totalorder 0, 0
  %p17 = pnand %p15, %p16
  %p18 = pneg %p17
  // Predicated region
  $region10: #{fwd.9} parent=0 // pred_check
    _
  $region11: #{fwd.9} parent=0 // pred_check_branch
    %20 = sbr.rel (%p17) target = $region13
  $region12: #{fwd.9} parent=0 // pred_region
    %21 = vst [vmem:[%s3] sm:$0x1] 0.0
    %22 = vst [vmem:[%s4] sm:$0x1] 0.0
  $region13: #{fwd.9} parent=0 // pred_fallthru
    _
  // Predicated region
  $region14: #{fwd.9} parent=0 // pred_check
    %p23 = pneg %p16
  $region15: #{fwd.9} parent=0 // pred_check_branch
    %25 = sbr.rel (%p23) target = $region17
  $region16: #{fwd.9} parent=0 // pred_region
    %26 = vst [vmem:[#allocation2] sm:$0xff] 0.0
    %27 = vst [vmem:[#allocation2 + $0x8] sm:$0xff] 0.0
    %28 = vst [vmem:[#allocation2 + $0x10] sm:$0xff] 0.0
    %29 = vst [vmem:[#allocation2 + $0x18] sm:$0xff] 0.0
  $region17: #{fwd.9} parent=0 // pred_fallthru
    _
  %v30 = vld [vmem:[#allocation2] sm:$0xff]
  %v31 = vld [vmem:[#allocation2 + $0x8] sm:$0xff]
  %v32 = vld [vmem:[#allocation2 + $0x10] sm:$0xff]
  %v33 = vld [vmem:[#allocation2 + $0x18] sm:$0xff]
  %v34 = vld [vmem:[%s0] sm:$0xf]
  %v35 = vld [vmem:[%s0 + $0x4] sm:$0xf]
  %v36 = vld [vmem:[%s0 + $0x8] sm:$0xf]
  %v37 = vld [vmem:[%s0 + $0xc] sm:$0xf]
  %v38 = vld [vmem:[%s1] sm:$0xf]
  %v39 = vld [vmem:[%s1 + $0x4] sm:$0xf]
  %v40 = vld [vmem:[%s1 + $0x8] sm:$0xf]
  %v41 = vld [vmem:[%s1 + $0xc] sm:$0xf]
  %v42 = vld [vmem:[%s1 + $0x10] sm:$0xf]
  %v43 = vld [vmem:[%s1 + $0x14] sm:$0xf]
  %v44 = vld [vmem:[%s1 + $0x18] sm:$0xf]
  %v45 = vld [vmem:[%s1 + $0x1c] sm:$0xf]
  %v46 = vld [vmem:[%s1 + $0x20] sm:$0xf]
  %v47 = vld [vmem:[%s1 + $0x24] sm:$0xf]
  %v48 = vld [vmem:[%s1 + $0x28] sm:$0xf]
  %v49 = vld [vmem:[%s1 + $0x2c] sm:$0xf]
  %v50 = vld [vmem:[%s1 + $0x30] sm:$0xf]
  %v51 = vld [vmem:[%s1 + $0x34] sm:$0xf]
  %v52 = vld [vmem:[%s1 + $0x38] sm:$0xf]
  %v53 = vld [vmem:[%s1 + $0x3c] sm:$0xf]
  %v58 = vunpack.c.l.b16 %v34
  %v59 = vunpack.c.l.b16 %v35
  %v60 = vunpack.c.l.b16 %v36
  %v61 = vunpack.c.l.b16 %v37
  %v62 = vpack.c.b16 %v59, %v58
  %v63 = vpack.c.b16 %v61, %v60
  %v82 = vunpack.c.l.b16 %v38
  %v83 = vunpack.c.l.b16 %v39
  %v84 = vunpack.c.l.b16 %v40
  %v85 = vunpack.c.l.b16 %v41
  %v86 = vunpack.c.l.b16 %v42
  %v87 = vunpack.c.l.b16 %v43
  %v88 = vunpack.c.l.b16 %v44
  %v89 = vunpack.c.l.b16 %v45
  %v90 = vunpack.c.l.b16 %v46
  %v91 = vunpack.c.l.b16 %v47
  %v92 = vunpack.c.l.b16 %v48
  %v93 = vunpack.c.l.b16 %v49
  %v94 = vunpack.c.l.b16 %v50
  %v95 = vunpack.c.l.b16 %v51
  %v96 = vunpack.c.l.b16 %v52
  %v97 = vunpack.c.l.b16 %v53
  %v98 = vpack.c.b16 %v83, %v82
  %v99 = vpack.c.b16 %v85, %v84
  %v100 = vpack.c.b16 %v87, %v86
  %v101 = vpack.c.b16 %v89, %v88
  %v102 = vpack.c.b16 %v91, %v90
  %v103 = vpack.c.b16 %v93, %v92
  %v104 = vpack.c.b16 %v95, %v94
  %v105 = vpack.c.b16 %v97, %v96
  %114 = vmatprep.subr.bf16.mxu0 0
  %115 = vmatpush1.bf16.msra.mxu0 %v98
  %116 = vmatprep.subr.bf16.mxu0 0
  %117 = vmatpush1.bf16.msra.mxu0 %v99
  %118 = vmatprep.subr.bf16.mxu0 0
  %119 = vmatpush1.bf16.msra.mxu0 %v100
  %120 = vmatprep.subr.bf16.mxu0 0
  %121 = vmatpush1.bf16.msra.mxu0 %v101
  %122 = vmatprep.subr.bf16.mxu0 0
  %123 = vmatpush1.bf16.msra.mxu0 %v102
  %124 = vmatprep.subr.bf16.mxu0 0
  %125 = vmatpush1.bf16.msra.mxu0 %v103
  %126 = vmatprep.subr.bf16.mxu0 0
  %127 = vmatpush1.bf16.msra.mxu0 %v104
  %128 = vmatprep.subr.bf16.mxu0 0
  %129 = vmatpush1.bf16.msra.mxu0 %v105
  %130 = vmatprep.subr.bf16.mxu0 0
  %131 = vmatpush1.bf16.msra.mxu0 0
  %132 = vmatprep.subr.bf16.mxu0 0
  %133 = vmatpush1.bf16.msra.mxu0 0
  %134 = vmatprep.subr.bf16.mxu0 0
  %135 = vmatpush1.bf16.msra.mxu0 0
  %136 = vmatprep.subr.bf16.mxu0 0
  %137 = vmatpush1.bf16.msra.mxu0 0
  %138 = vmatprep.subr.bf16.mxu0 0
  %139 = vmatpush1.bf16.msra.mxu0 0
  %140 = vmatprep.subr.bf16.mxu0 0
  %141 = vmatpush1.bf16.msra.mxu0 0
  %142 = vmatprep.subr.bf16.mxu0 0
  %143 = vmatpush1.bf16.msra.mxu0 0
  %144 = vmatprep.subr.bf16.mxu0 0
  %145 = vmatpush1.bf16.msra.mxu0 0
  %146 = vmatprep.mubr.bf16.mxu0 0
  %147 = vmatmul.mubr.bf16.gmra.mrb[0].mxu0 %v62
  %v148 = vpop.f32.mrb[0].mxu0
  %v149 = vadd.f32 0.0, %v148
  %v150 = vpop.f32.mrb[0].mxu0
  %v151 = vpop.f32.mrb[0].mxu0
  %v152 = vadd.f32 0.0, %v151
  %v153 = vpop.f32.mrb[0].mxu0
  %154 = vmatprep.mubr.bf16.mxu0 0
  %155 = vmatmul.mubr.bf16.gmra.mrb[0].mxu0 %v63
  %v156 = vpop.f32.mrb[0].mxu0
  %v157 = vadd.f32 0.0, %v156
  %v158 = vpop.f32.mrb[0].mxu0
  %v159 = vpop.f32.mrb[0].mxu0
  %v160 = vadd.f32 0.0, %v159
  %v161 = vpop.f32.mrb[0].mxu0
  %162 = vdwg.mxu0
  %v163 = vadd.f32 %v30, %v149
  %v164 = vadd.f32 %v31, %v152
  %v165 = vadd.f32 %v32, %v157
  %v166 = vadd.f32 %v33, %v160
  %167 = vst [vmem:[#allocation2] sm:$0xff] %v163
  %168 = vst [vmem:[#allocation2 + $0x8] sm:$0xff] %v164
  %169 = vst [vmem:[#allocation2 + $0x10] sm:$0xff] %v165
  %170 = vst [vmem:[#allocation2 + $0x18] sm:$0xff] %v166
  // Predicated region
  $region18: #{fwd.9} parent=0 // pred_check
    %p171 = pneg %p16
  $region19: #{fwd.9} parent=0 // pred_check_branch
    %173 = sbr.rel (%p171) target = $region21
  $region20: #{fwd.9} parent=0 // pred_region
    %v174 = vld [vmem:[#allocation2] sm:$0xff]
    %v175 = vld [vmem:[#allocation2 + $0x8] sm:$0xff]
    %v176 = vld [vmem:[#allocation2 + $0x10] sm:$0xff]
    %v177 = vld [vmem:[#allocation2 + $0x18] sm:$0xff]
    %v178 = vpack.c.bf16 %v175, %v174
    %v179 = vpack.c.bf16 %v177, %v176
    %v182 = vunpack.c.l.b16 %v178
    %v183 = vunpack.c.h.b16 %v178
    %v184 = vunpack.c.l.b16 %v179
    %v185 = vunpack.c.h.b16 %v179
    %v186 = vpack.c.b16 %v182, %v182
    %v187 = vpack.c.b16 %v183, %v183
    %v188 = vpack.c.b16 %v184, %v184
    %v189 = vpack.c.b16 %v185, %v185
    %194 = vst [vmem:[%s2] sm:$0xf] %v186
    %195 = vst [vmem:[%s2 + $0x4] sm:$0xf] %v187
    %196 = vst [vmem:[%s2 + $0x8] sm:$0xf] %v188
    %197 = vst [vmem:[%s2 + $0xc] sm:$0xf] %v189
    %v198 = vld [vmem:[%s3] sm:$0x1]
    %v199 = vadd.f32 %v174, %v175
    %v200 = vadd.f32 %v199, %v176
    %v201 = vadd.f32 %v200, %v177
    %v202 = vrot.slane %v201, 4
    %v203 = vadd.f32 %v201, %v202
    %v204 = vrot.slane %v203, 2
    %v205 = vadd.f32 %v203, %v204
    %v206 = vrot.slane %v205, 1
    %v207 = vadd.f32 %v205, %v206
    %v208 = vadd.f32 %v198, %v207
    %209 = vst [vmem:[%s3] sm:$0x1] %v208
    %v210 = vld [vmem:[%s4] sm:$0x1]
    %v211 = vmul.f32 %v174, %v174
    %v212 = vmul.f32 %v175, %v175
    %v213 = vmul.f32 %v176, %v176
    %v214 = vmul.f32 %v177, %v177
    %v215 = vadd.f32 %v211, %v212
    %v216 = vadd.f32 %v215, %v213
    %v217 = vadd.f32 %v216, %v214
    %v218 = vrot.slane %v217, 4
    %v219 = vadd.f32 %v217, %v218
    %v220 = vrot.slane %v219, 2
    %v221 = vadd.f32 %v219, %v220
    %v222 = vrot.slane %v221, 1
    %v223 = vadd.f32 %v221, %v222
    %v224 = vadd.f32 %v210, %v223
    %225 = vst [vmem:[%s4] sm:$0x1] %v224
  $region21: #{fwd.9} parent=0 // pred_fallthru
    _
  // Predicated region
  $region22: #{fwd.9} parent=0 // pred_check
    _
  $region23: #{fwd.9} parent=0 // pred_check_branch
    %227 = sbr.rel (0) target = $region25
  $region24: #{fwd.9} parent=0 // pred_region
    _
  $region25: #{fwd.9} parent=0 // pred_fallthru
    _
  // Predicated region
  $region26: #{fwd.9} parent=0 // pred_check
    _
  $region27: #{fwd.9} parent=0 // pred_check_branch
    %229 = sbr.rel (0) target = $region29
  $region28: #{fwd.9} parent=0 // pred_region
    _
  $region29: #{fwd.9} parent=0 // pred_fallthru
    _
  // Predicated region
  $region30: #{fwd.9} parent=0 // pred_check
    _
  $region31: #{fwd.9} parent=0 // pred_check_branch
    %231 = sbr.rel (0) target = $region33
  $region32: #{fwd.9} parent=0 // pred_region
    _
  $region33: #{fwd.9} parent=0 // pred_fallthru
    _
  // Predicated region
  $region34: #{fwd.9} parent=0 // pred_check
    _
  $region35: #{fwd.9} parent=0 // pred_check_branch
    %233 = sbr.rel (0) target = $region37
  $region36: #{fwd.9} parent=0 // pred_region
    _
  $region37: #{fwd.9} parent=0 // pred_fallthru
    _
  // Predicated region
  $region38: #{fwd.9} parent=0 // pred_check
    _
  $region39: #{fwd.9} parent=0 // pred_check_branch
    %235 = sbr.rel (0) target = $region41
  $region40: #{fwd.9} parent=0 // pred_region
    _
  $region41: #{fwd.9} parent=0 // pred_fallthru
    _
  // Predicated region
  $region42: #{fwd.9} parent=0 // pred_check
    _
  $region43: #{fwd.9} parent=0 // pred_check_branch
    %237 = sbr.rel (0) target = $region45
  $region44: #{fwd.9} parent=0 // pred_region
    _
  $region45: #{fwd.9} parent=0 // pred_fallthru
    _

// kernel: fwd.11
$region0: #{fwd.11}
  #allocation0 [shape = 'u32[]', space=smem, size = 0x4, offset = 0x4, fixed_abs, tag = 'smem constant byte address 0x4 - core index']
  #allocation1 [shape = 'u32[144,128]{1,0:T(1,128)}', space=vmem, size = 0x12000, scoped, tag = 'internal scratch']
  #allocation2 [shape = 'f32[8,128]{1,0:T(8,128)}', space=vmem, size = 0x1000, scoped, tag = 'scratch operand']
  %s0 = inlined_call_operand.vmem [shape: bf16[8,256], index: 0, kind: input, shape index: {}]
  %s1 = inlined_call_operand.vmem [shape: bf16[256,128], index: 1, kind: input, shape index: {}]
  %s2 = inlined_call_operand.vmem [shape: f32[1,128], index: 2, kind: input, shape index: {}]
  %s3 = inlined_call_operand.vmem [shape: f32[8,128], index: 3, kind: output, shape index: {}]
  %s4 = sld [smem:[#allocation0]]
  $region30: #{fwd.11} parent=0
    _
  %s6 = ssub.s32 1, %s4
  %s7 = scalar_select 0, %s6, %s4
  // Predicated region
  $region2: #{fwd.11} parent=0 // pred_check
    _
  $region3: #{fwd.11} parent=0 // pred_check_branch
    %9 = sbr.rel (0) target = $region5
  $region4: #{fwd.11} parent=0 // pred_region
    _
  $region5: #{fwd.11} parent=0 // pred_fallthru
    _
  // Predicated region
  $region6: #{fwd.11} parent=0 // pred_check
    _
  $region7: #{fwd.11} parent=0 // pred_check_branch
    %11 = sbr.rel (0) target = $region9
  $region8: #{fwd.11} parent=0 // pred_region
    _
  $region9: #{fwd.11} parent=0 // pred_fallthru
    _
  // Predicated region
  $region10: #{fwd.11} parent=0 // pred_check
    _
  $region11: #{fwd.11} parent=0 // pred_check_branch
    %13 = sbr.rel (0) target = $region13
  $region12: #{fwd.11} parent=0 // pred_region
    _
  $region13: #{fwd.11} parent=0 // pred_fallthru
    _
  %p15 = scmp.eq.s32.totalorder 0, 0
  // Predicated region
  $region14: #{fwd.11} parent=0 // pred_check
    %p16 = pneg %p15
  $region15: #{fwd.11} parent=0 // pred_check_branch
    %18 = sbr.rel (%p16) target = $region17
  $region16: #{fwd.11} parent=0 // pred_region
    %19 = vst [vmem:[#allocation2] sm:$0xff] 0.0
  $region17: #{fwd.11} parent=0 // pred_fallthru
    _
  %v20 = vld [vmem:[#allocation2] sm:$0xff]
  %v21 = vld [vmem:[%s0] sm:$0xff]
  %v22 = vld [vmem:[%s1] sm:$0xf]
  %v23 = vld [vmem:[%s1 + $0x4] sm:$0xf]
  %v24 = vld [vmem:[%s1 + $0x8] sm:$0xf]
  %v25 = vld [vmem:[%s1 + $0xc] sm:$0xf]
  %v26 = vld [vmem:[%s1 + $0x10] sm:$0xf]
  %v27 = vld [vmem:[%s1 + $0x14] sm:$0xf]
  %v28 = vld [vmem:[%s1 + $0x18] sm:$0xf]
  %v29 = vld [vmem:[%s1 + $0x1c] sm:$0xf]
  %v30 = vld [vmem:[%s1 + $0x20] sm:$0xf]
  %v31 = vld [vmem:[%s1 + $0x24] sm:$0xf]
  %v32 = vld [vmem:[%s1 + $0x28] sm:$0xf]
  %v33 = vld [vmem:[%s1 + $0x2c] sm:$0xf]
  %v34 = vld [vmem:[%s1 + $0x30] sm:$0xf]
  %v35 = vld [vmem:[%s1 + $0x34] sm:$0xf]
  %v36 = vld [vmem:[%s1 + $0x38] sm:$0xf]
  %v37 = vld [vmem:[%s1 + $0x3c] sm:$0xf]
  %v38 = vld [vmem:[%s1 + $0x40] sm:$0xf]
  %v39 = vld [vmem:[%s1 + $0x44] sm:$0xf]
  %v40 = vld [vmem:[%s1 + $0x48] sm:$0xf]
  %v41 = vld [vmem:[%s1 + $0x4c] sm:$0xf]
  %v42 = vld [vmem:[%s1 + $0x50] sm:$0xf]
  %v43 = vld [vmem:[%s1 + $0x54] sm:$0xf]
  %v44 = vld [vmem:[%s1 + $0x58] sm:$0xf]
  %v45 = vld [vmem:[%s1 + $0x5c] sm:$0xf]
  %v46 = vld [vmem:[%s1 + $0x60] sm:$0xf]
  %v47 = vld [vmem:[%s1 + $0x64] sm:$0xf]
  %v48 = vld [vmem:[%s1 + $0x68] sm:$0xf]
  %v49 = vld [vmem:[%s1 + $0x6c] sm:$0xf]
  %v50 = vld [vmem:[%s1 + $0x70] sm:$0xf]
  %v51 = vld [vmem:[%s1 + $0x74] sm:$0xf]
  %v52 = vld [vmem:[%s1 + $0x78] sm:$0xf]
  %v53 = vld [vmem:[%s1 + $0x7c] sm:$0xf]
  %v55 = vunpack.c.l.b16 %v21
  %v56 = vunpack.c.h.b16 %v21
  %v57 = vpack.c.b16 %v55, %v55
  %v58 = vpack.c.b16 %v56, %v56
  %v93 = vunpack.c.l.b16 %v22
  %v94 = vunpack.c.l.b16 %v23
  %v95 = vunpack.c.l.b16 %v24
  %v96 = vunpack.c.l.b16 %v25
  %v97 = vunpack.c.l.b16 %v26
  %v98 = vunpack.c.l.b16 %v27
  %v99 = vunpack.c.l.b16 %v28
  %v100 = vunpack.c.l.b16 %v29
  %v101 = vunpack.c.l.b16 %v30
  %v102 = vunpack.c.l.b16 %v31
  %v103 = vunpack.c.l.b16 %v32
  %v104 = vunpack.c.l.b16 %v33
  %v105 = vunpack.c.l.b16 %v34
  %v106 = vunpack.c.l.b16 %v35
  %v107 = vunpack.c.l.b16 %v36
  %v108 = vunpack.c.l.b16 %v37
  %v109 = vunpack.c.l.b16 %v38
  %v110 = vunpack.c.l.b16 %v39
  %v111 = vunpack.c.l.b16 %v40
  %v112 = vunpack.c.l.b16 %v41
  %v113 = vunpack.c.l.b16 %v42
  %v114 = vunpack.c.l.b16 %v43
  %v115 = vunpack.c.l.b16 %v44
  %v116 = vunpack.c.l.b16 %v45
  %v117 = vunpack.c.l.b16 %v46
  %v118 = vunpack.c.l.b16 %v47
  %v119 = vunpack.c.l.b16 %v48
  %v120 = vunpack.c.l.b16 %v49
  %v121 = vunpack.c.l.b16 %v50
  %v122 = vunpack.c.l.b16 %v51
  %v123 = vunpack.c.l.b16 %v52
  %v124 = vunpack.c.l.b16 %v53
  %v125 = vpack.c.b16 %v94, %v93
  %v126 = vpack.c.b16 %v96, %v95
  %v127 = vpack.c.b16 %v98, %v97
  %v128 = vpack.c.b16 %v100, %v99
  %v129 = vpack.c.b16 %v102, %v101
  %v130 = vpack.c.b16 %v104, %v103
  %v131 = vpack.c.b16 %v106, %v105
  %v132 = vpack.c.b16 %v108, %v107
  %v133 = vpack.c.b16 %v110, %v109
  %v134 = vpack.c.b16 %v112, %v111
  %v135 = vpack.c.b16 %v114, %v113
  %v136 = vpack.c.b16 %v116, %v115
  %v137 = vpack.c.b16 %v118, %v117
  %v138 = vpack.c.b16 %v120, %v119
  %v139 = vpack.c.b16 %v122, %v121
  %v140 = vpack.c.b16 %v124, %v123
  %157 = vmatprep.subr.bf16.mxu0 0
  %158 = vmatpush1.bf16.msra.mxu0 %v125
  %159 = vmatprep.subr.bf16.mxu0 0
  %160 = vmatpush1.bf16.msra.mxu0 %v126
  %161 = vmatprep.subr.bf16.mxu0 0
  %162 = vmatpush1.bf16.msra.mxu0 %v127
  %163 = vmatprep.subr.bf16.mxu0 0
  %164 = vmatpush1.bf16.msra.mxu0 %v128
  %165 = vmatprep.subr.bf16.mxu0 0
  %166 = vmatpush1.bf16.msra.mxu0 %v129
  %167 = vmatprep.subr.bf16.mxu0 0
  %168 = vmatpush1.bf16.msra.mxu0 %v130
  %169 = vmatprep.subr.bf16.mxu0 0
  %170 = vmatpush1.bf16.msra.mxu0 %v131
  %171 = vmatprep.subr.bf16.mxu0 0
  %172 = vmatpush1.bf16.msra.mxu0 %v132
  %173 = vmatprep.subr.bf16.mxu0 0
  %174 = vmatpush1.bf16.msra.mxu0 %v133
  %175 = vmatprep.subr.bf16.mxu0 0
  %176 = vmatpush1.bf16.msra.mxu0 %v134
  %177 = vmatprep.subr.bf16.mxu0 0
  %178 = vmatpush1.bf16.msra.mxu0 %v135
  %179 = vmatprep.subr.bf16.mxu0 0
  %180 = vmatpush1.bf16.msra.mxu0 %v136
  %181 = vmatprep.subr.bf16.mxu0 0
  %182 = vmatpush1.bf16.msra.mxu0 %v137
  %183 = vmatprep.subr.bf16.mxu0 0
  %184 = vmatpush1.bf16.msra.mxu0 %v138
  %185 = vmatprep.subr.bf16.mxu0 0
  %186 = vmatpush1.bf16.msra.mxu0 %v139
  %187 = vmatprep.subr.bf16.mxu0 0
  %188 = vmatpush1.bf16.msra.mxu0 %v140
  %189 = vmatprep.mubr.bf16.mxu0 %v58
  %190 = vmatmul.mubr.bf16.gmra.mrb[0].mxu0 %v57
  %v191 = vpop.f32.mrb[0].mxu0
  %v192 = vadd.f32 0.0, %v191
  %v193 = vpop.f32.mrb[0].mxu0
  %v194 = vpop.f32.mrb[0].mxu0
  %v195 = vpop.f32.mrb[0].mxu0
  %196 = vdwg.mxu0
  %v197 = vadd.f32 %v20, %v192
  %198 = vst [vmem:[#allocation2] sm:$0xff] %v197
  // Predicated region
  $region18: #{fwd.11} parent=0 // pred_check
    %p199 = pneg %p15
  $region19: #{fwd.11} parent=0 // pred_check_branch
    %201 = sbr.rel (%p199) target = $region21
  $region20: #{fwd.11} parent=0 // pred_region
    %v202 = vld [vmem:[#allocation2] sm:$0xff]
    %v203 = vld [vmem:[%s2] sm:$0x1]
    %v205 = vlaneseq
    %v206 = vshrl.u32 %v205, 7
    %v207 = vsub.s32 0, %v206
    %v208 = vrot.slane %v203, %v207
    %v210 = vadd.f32 %v202, %v208
    %211 = vst [vmem:[%s3] sm:$0xff] %v210
  $region21: #{fwd.11} parent=0 // pred_fallthru
    _
  // Predicated region
  $region22: #{fwd.11} parent=0 // pred_check
    _
  $region23: #{fwd.11} parent=0 // pred_check_branch
    %213 = sbr.rel (0) target = $region25
  $region24: #{fwd.11} parent=0 // pred_region
    _
  $region25: #{fwd.11} parent=0 // pred_fallthru
    _
  // Predicated region
  $region26: #{fwd.11} parent=0 // pred_check
    _
  $region27: #{fwd.11} parent=0 // pred_check_branch
    %215 = sbr.rel (0) target = $region29
  $region28: #{fwd.11} parent=0 // pred_region
    _
  $region29: #{fwd.11} parent=0 // pred_fallthru
    _

</llo_original>
